<compile_context>
chip_gen: v7x
topology: tpu7x:2x2x1
jax: 0.10.0
libtpu: 0.0.40
codegen_flags: <defaults>
</compile_context>

<pallas_src>
import jax
import jax.numpy as jnp
from jax.experimental import pallas as pl
from jax.experimental.pallas import tpu as pltpu

_N = 10  # the module hard-codes pairs over the first 10 rows


def _pair_ffn_kernel(xw_ref, wpair_ref, b1_ref, w2sym_ref, b2_ref, o_ref):
    # [TB, 10*D] bf16 @ [10*D, NP*H] bf16 -> f32 : per-pair first Linear for all pairs.
    h = jnp.dot(xw_ref[...], wpair_ref[...], preferred_element_type=jnp.float32)
    h = jnp.maximum(h + b1_ref[...], 0.0)                      # bias + ReLU (f32, VPU)
    # [TB, NP*H] f32 @ [NP*H, 100] f32 : second Linear + symmetric scatter, folded into
    # one block-structured weight matrix -> lane-dense [TB, 100] result.
    v = jnp.dot(h, w2sym_ref[...], preferred_element_type=jnp.float32)
    o_ref[...] = (v + b2_ref[...]).astype(o_ref.dtype)          # masked b2 keeps diag 0


def _build_constants(w1, b1, w2, b2, d, hdim):
    """Wrapper-side (one-time) constants: pair-expansion and symmetrization weights."""
    n = _N
    ii, jj = jnp.triu_indices(n, k=1)                 # 45 pairs with i < j
    n_pairs = int(ii.shape[0])

    # Pad the pair count slightly so the hidden lane width NP*H is a multiple of 128.
    np_pad = n_pairs
    for cand in range(n_pairs, n_pairs + 9):
        if (cand * hdim) % 128 == 0:
            np_pad = cand
            break
    pad = np_pad - n_pairs

    e_i = jax.nn.one_hot(ii, n, dtype=jnp.float32)    # [45, 10] selects i of each pair
    e_j = jax.nn.one_hot(jj, n, dtype=jnp.float32)    # [45, 10] selects j of each pair
    if pad:
        zeros = jnp.zeros((pad, n), jnp.float32)
        e_i = jnp.concatenate([e_i, zeros], axis=0)
        e_j = jnp.concatenate([e_j, zeros], axis=0)

    w1a, w1b = w1[:d, :], w1[d:, :]                   # the two concat halves of W1
    # W_pair[(m,d'), (q,k)] = e_i[q,m]*w1a[d',k] + e_j[q,m]*w1b[d',k]
    w_pair = (jnp.einsum("qm,dk->mdqk", e_i, w1a)
              + jnp.einsum("qm,dk->mdqk", e_j, w1b)).reshape(n * d, np_pad * hdim)
    w_pair = w_pair.astype(jnp.bfloat16)

    b1_tiled = jnp.tile(b1.astype(jnp.float32), (np_pad,)).reshape(1, np_pad * hdim)

    # W2_sym[(q,k), p] = w2[k] if p in {i*10+j, j*10+i} for pair q, else 0.
    p_sym = (jax.nn.one_hot(ii * n + jj, n * n, dtype=jnp.float32)
             + jax.nn.one_hot(jj * n + ii, n * n, dtype=jnp.float32))
    if pad:
        p_sym = jnp.concatenate([p_sym, jnp.zeros((pad, n * n), jnp.float32)], axis=0)
    w2_sym = jnp.einsum("k,qp->qkp", w2[:, 0].astype(jnp.float32),
                        p_sym).reshape(np_pad * hdim, n * n)

    lane = jnp.arange(n * n)
    off_diag = (lane // n) != (lane % n)
    b2_row = jnp.where(off_diag, b2[0].astype(jnp.float32), 0.0).reshape(1, n * n)
    return w_pair, b1_tiled, w2_sym, b2_row, np_pad


def output_block1_forward(input_matrix, w1, b1, w2, b2, *, block_batch=128):
    """Pallas implementation of output_block1.forward.

    input_matrix: [B, N, D] (N >= 10; only the first 10 rows are used)
    w1: [2D, H], b1: [H]    (first Linear, x @ W layout)
    w2: [H, 1],  b2: [1]    (second Linear)
    returns [B, 10, 10] float32, symmetric with zero diagonal.
    """
    bsz, n_nodes, d = input_matrix.shape
    two_d, hdim = w1.shape
    assert two_d == 2 * d and n_nodes >= _N

    w_pair, b1_tiled, w2_sym, b2_row, np_pad = _build_constants(w1, b1, w2, b2, d, hdim)

    # bf16 input stream, flattened to a lane-dense [B, 10*D] slab in the wrapper.
    x_wide = input_matrix[:, :_N, :].reshape(bsz, _N * d).astype(jnp.bfloat16)

    if bsz <= block_batch:
        tb, b_pad = bsz, bsz              # block == full array; no (8,128) constraint
    else:
        tb = block_batch                  # multiple of 8
        b_pad = ((bsz + tb - 1) // tb) * tb
        if b_pad != bsz:
            x_wide = jnp.pad(x_wide, ((0, b_pad - bsz), (0, 0)))
    grid = (b_pad // tb,)

    nd, nph, nn = _N * d, np_pad * hdim, _N * _N
    cost = pl.CostEstimate(
        flops=int(b_pad) * (2 * nd * nph + 2 * nph * nn + 3 * nph),
        transcendentals=0,
        bytes_accessed=int(x_wide.size * 2 + w_pair.size * 2 + w2_sym.size * 4
                           + b1_tiled.size * 4 + b2_row.size * 4 + b_pad * nn * 4),
    )

    out_flat = pl.pallas_call(
        _pair_ffn_kernel,
        out_shape=jax.ShapeDtypeStruct((b_pad, nn), jnp.float32),
        grid=grid,
        in_specs=[
            pl.BlockSpec((tb, nd), lambda bi: (bi, 0)),        # per-step batch slab
            pl.BlockSpec((nd, nph), lambda bi: (0, 0)),        # weights stay resident
            pl.BlockSpec((1, nph), lambda bi: (0, 0)),
            pl.BlockSpec((nph, nn), lambda bi: (0, 0)),
            pl.BlockSpec((1, nn), lambda bi: (0, 0)),
        ],
        out_specs=pl.BlockSpec((tb, nn), lambda bi: (bi, 0)),  # lane-dense [TB, 100]
        compiler_params=pltpu.CompilerParams(
            dimension_semantics=("parallel",),
            vmem_limit_bytes=32 * 1024 * 1024),
        cost_estimate=cost,
    )(x_wide, w_pair, b1_tiled, w2_sym, b2_row)

    return out_flat[:bsz].reshape(bsz, _N, _N)


def init_params(key, input_dim, hidden_dim=64):
    """PyTorch-Linear-style uniform init, in x @ W layout."""
    k1, k2, k3, k4 = jax.random.split(key, 4)
    fan1 = 2 * input_dim
    bound1 = 1.0 / jnp.sqrt(fan1)
    bound2 = 1.0 / jnp.sqrt(hidden_dim)
    w1 = jax.random.uniform(k1, (fan1, hidden_dim), jnp.float32, -bound1, bound1)
    b1 = jax.random.uniform(k2, (hidden_dim,), jnp.float32, -bound1, bound1)
    w2 = jax.random.uniform(k3, (hidden_dim, 1), jnp.float32, -bound2, bound2)
    b2 = jax.random.uniform(k4, (1,), jnp.float32, -bound2, bound2)
    return w1, b1, w2, b2


def reference_forward(x, w1, b1, w2, b2):
    """Vectorized JAX reference mirroring the torch double loop (concat-based).
    Uses the same bf16 first-layer operands / f32 accumulation policy as the kernel."""
    n = _N
    ii, jj = jnp.triu_indices(n, k=1)
    cat = jnp.concatenate([x[:, ii, :], x[:, jj, :]], axis=-1).astype(jnp.bfloat16)
    h = jnp.einsum("bpk,kh->bph", cat, w1.astype(jnp.bfloat16),
                   preferred_element_type=jnp.float32) + b1
    h = jnp.maximum(h, 0.0)
    v = jnp.sum(h * w2[:, 0], axis=-1) + b2[0]                  # [B, 45]
    out = jnp.zeros((x.shape[0], n, n), jnp.float32)
    out = out.at[:, ii, jj].set(v)
    out = out.at[:, jj, ii].set(v)
    return out


if __name__ == "__main__":
    key = jax.random.PRNGKey(0)
    k_x, k_p, k_x2 = jax.random.split(key, 3)

    batch = 2
    n_nodes = 10        # module only references the first 10 rows
    input_dim = 16
    hidden_dim = 64

    x = jax.random.normal(k_x, (batch, n_nodes, input_dim), jnp.float32)
    w1, b1, w2, b2 = init_params(k_p, input_dim, hidden_dim)

    out = jax.block_until_ready(output_block1_forward(x, w1, b1, w2, b2))
    assert out.shape == (batch, _N, _N)

    ref = reference_forward(x, w1, b1, w2, b2)
    err = float(jnp.max(jnp.abs(out - ref)))
    assert jnp.allclose(out, ref, atol=2e-3, rtol=2e-3), err
    assert jnp.allclose(out, jnp.swapaxes(out, 1, 2), atol=1e-6)          # symmetric
    diag = out[:, jnp.arange(_N), jnp.arange(_N)]
    assert jnp.allclose(diag, 0.0, atol=1e-6)                             # zero diagonal

    # Exercise the batch-blocked / padded multi-step-grid path as well.
    batch2 = 37
    x2 = jax.random.normal(k_x2, (batch2, n_nodes, input_dim), jnp.float32)
    out2 = jax.block_until_ready(
        output_block1_forward(x2, w1, b1, w2, b2, block_batch=16))
    ref2 = reference_forward(x2, w1, b1, w2, b2)
    err2 = float(jnp.max(jnp.abs(out2 - ref2)))
    assert out2.shape == (batch2, _N, _N)
    assert jnp.allclose(out2, ref2, atol=2e-3, rtol=2e-3), err2

    print("KERNEL_OK")
</pallas_src>

<mosaic_0001>
module attributes {stable_mosaic.version = 11 : i64} {
  func.func @_pair_ffn_kernel(%arg0: i32, %arg1: memref<2x160xbf16, #tpu.memory_space<vmem>>, %arg2: memref<160x2944xbf16, #tpu.memory_space<vmem>>, %arg3: memref<1x2944xf32, #tpu.memory_space<vmem>>, %arg4: memref<2944x100xf32, #tpu.memory_space<vmem>>, %arg5: memref<1x100xf32, #tpu.memory_space<vmem>>, %arg6: memref<2x100xf32, #tpu.memory_space<vmem>>) attributes {dimension_semantics = [#tpu.dimension_semantics<parallel>], iteration_bounds = array<i64: 1>, scalar_prefetch = 0 : i64, scratch_operands = 0 : i64, tpu.core_type = #tpu.core_type<tc>, window_params = [{transform_indices = @transform_0, window_bounds = array<i64: 2, 160>}, {pipeline_mode = #tpu.pipeline_mode<synchronous>, transform_indices = @transform_1, window_bounds = array<i64: 160, 2944>}, {pipeline_mode = #tpu.pipeline_mode<synchronous>, transform_indices = @transform_2, window_bounds = array<i64: 1, 2944>}, {pipeline_mode = #tpu.pipeline_mode<synchronous>, transform_indices = @transform_3, window_bounds = array<i64: 2944, 100>}, {pipeline_mode = #tpu.pipeline_mode<synchronous>, transform_indices = @transform_4, window_bounds = array<i64: 1, 100>}, {transform_indices = @transform_5, window_bounds = array<i64: 2, 100>}]} {
    %c0 = arith.constant 0 : index
    %c0_0 = arith.constant 0 : index
    %0 = vector.load %arg1[%c0, %c0_0] : memref<2x160xbf16, #tpu.memory_space<vmem>>, vector<2x160xbf16>
    %c0_1 = arith.constant 0 : index
    %c0_2 = arith.constant 0 : index
    %1 = vector.load %arg2[%c0_1, %c0_2] : memref<160x2944xbf16, #tpu.memory_space<vmem>>, vector<160x2944xbf16>
    %cst = arith.constant dense<0.000000e+00> : vector<2x2944xf32>
    %2 = tpu.matmul %0, %1, %cst {dimension_numbers = #tpu.dot_dimension_numbers<[1], [0], [0], [1], [0, 0, 1, 1], [], []>} : vector<2x160xbf16>, vector<160x2944xbf16>, vector<2x2944xf32> -> vector<2x2944xf32>
    %c0_3 = arith.constant 0 : index
    %c0_4 = arith.constant 0 : index
    %3 = vector.load %arg3[%c0_3, %c0_4] : memref<1x2944xf32, #tpu.memory_space<vmem>>, vector<1x2944xf32>
    %4 = vector.broadcast %3 : vector<1x2944xf32> to vector<2x2944xf32>
    %5 = arith.addf %2, %4 : vector<2x2944xf32>
    %cst_5 = arith.constant 0.000000e+00 : f32
    %6 = vector.broadcast %cst_5 : f32 to vector<2x2944xf32>
    %7 = arith.maximumf %5, %6 : vector<2x2944xf32>
    %c0_6 = arith.constant 0 : index
    %c0_7 = arith.constant 0 : index
    %8 = vector.load %arg4[%c0_6, %c0_7] : memref<2944x100xf32, #tpu.memory_space<vmem>>, vector<2944x100xf32>
    %cst_8 = arith.constant dense<0.000000e+00> : vector<2x100xf32>
    %9 = tpu.matmul %7, %8, %cst_8 {dimension_numbers = #tpu.dot_dimension_numbers<[1], [0], [0], [1], [0, 0, 1, 1], [], []>} : vector<2x2944xf32>, vector<2944x100xf32>, vector<2x100xf32> -> vector<2x100xf32>
    %c0_9 = arith.constant 0 : index
    %c0_10 = arith.constant 0 : index
    %10 = vector.load %arg5[%c0_9, %c0_10] : memref<1x100xf32, #tpu.memory_space<vmem>>, vector<1x100xf32>
    %11 = vector.broadcast %10 : vector<1x100xf32> to vector<2x100xf32>
    %12 = arith.addf %9, %11 : vector<2x100xf32>
    %c0_11 = arith.constant 0 : index
    %c0_12 = arith.constant 0 : index
    %13 = vector.load %arg6[%c0_11, %c0_12] : memref<2x100xf32, #tpu.memory_space<vmem>>, vector<2x100xf32>
    tpu.vector_store %arg6[%c0_11, %c0_12], %12 {strides = array<i32>} : memref<2x100xf32, #tpu.memory_space<vmem>>, vector<2x100xf32>,
    return
  }
  func.func @transform_0(%arg0: i32) -> (i32, i32) {
    %c0_i32 = arith.constant 0 : i32
    %c0_i32_0 = arith.constant 0 : i32
    return %arg0, %c0_i32 : i32, i32
  }
  func.func @transform_1(%arg0: i32) -> (i32, i32) {
    %c0_i32 = arith.constant 0 : i32
    %c0_i32_0 = arith.constant 0 : i32
    %c0_i32_1 = arith.constant 0 : i32
    return %c0_i32, %c0_i32_0 : i32, i32
  }
  func.func @transform_2(%arg0: i32) -> (i32, i32) {
    %c0_i32 = arith.constant 0 : i32
    %c0_i32_0 = arith.constant 0 : i32
    %c0_i32_1 = arith.constant 0 : i32
    return %c0_i32, %c0_i32_0 : i32, i32
  }
  func.func @transform_3(%arg0: i32) -> (i32, i32) {
    %c0_i32 = arith.constant 0 : i32
    %c0_i32_0 = arith.constant 0 : i32
    %c0_i32_1 = arith.constant 0 : i32
    return %c0_i32, %c0_i32_0 : i32, i32
  }
  func.func @transform_4(%arg0: i32) -> (i32, i32) {
    %c0_i32 = arith.constant 0 : i32
    %c0_i32_0 = arith.constant 0 : i32
    %c0_i32_1 = arith.constant 0 : i32
    return %c0_i32, %c0_i32_0 : i32, i32
  }
  func.func @transform_5(%arg0: i32) -> (i32, i32) {
    %c0_i32 = arith.constant 0 : i32
    %c0_i32_0 = arith.constant 0 : i32
    return %arg0, %c0_i32 : i32, i32
  }
}

</mosaic_0001>

<llo_original>
// kernel: tpu_custom_call.1
$region0: #{tpu_custom_call.1}
  #allocation0 [shape = 'u32[]', space=smem, size = 0x4, offset = 0x4, fixed_abs, tag = 'smem constant byte address 0x4 - core index']
  #allocation1 [shape = 'u32[144,128]{1,0:T(1,128)}', space=vmem, size = 0x12000, scoped, tag = 'internal scratch']
  %s0 = inlined_call_operand.vmem [shape: bf16[2,160], index: 0, kind: input, shape index: {}]
  %s1 = inlined_call_operand.vmem [shape: bf16[160,2944], index: 1, kind: input, shape index: {}]
  %s2 = inlined_call_operand.vmem [shape: f32[1,2944], index: 2, kind: input, shape index: {}]
  %s3 = inlined_call_operand.vmem [shape: f32[2944,100], index: 3, kind: input, shape index: {}]
  %s4 = inlined_call_operand.vmem [shape: f32[1,100], index: 4, kind: input, shape index: {}]
  %s5 = inlined_call_operand.hbm [shape: f32[2,100], index: 5, kind: output, shape index: {}]
  %s6 = sld [smem:[#allocation0]]
  $region30: #{tpu_custom_call.1} parent=0
    _
  %s8 = ssub.s32 1, %s6
  %s9 = scalar_select 0, %s8, %s6
  $region1: #{tpu_custom_call.1} parent=0
    #allocation2 [shape = 'u8[1024]{0}', space=vmem, size = 0x400, scoped, tag = 'output window, operand 0, single buffered']
    #allocation3 [shape = 's32[1]{0}', space=sflag, size = 0x4, scoped, tag = 'scoped memory for tpu_custom_call.1']
    %10 = vsyncpa [#allocation3], 0
    // Predicated region
    $region2: #{tpu_custom_call.1} parent=1 // pred_check
      _
    $region3: #{tpu_custom_call.1} parent=1 // pred_check_branch
      %12 = sbr.rel (0) target = $region5
    $region4: #{tpu_custom_call.1} parent=1 // pred_region
      _
    $region5: #{tpu_custom_call.1} parent=1 // pred_fallthru
      _
    // Predicated region
    $region6: #{tpu_custom_call.1} parent=1 // pred_check
      _
    $region7: #{tpu_custom_call.1} parent=1 // pred_check_branch
      %14 = sbr.rel (0) target = $region9
    $region8: #{tpu_custom_call.1} parent=1 // pred_region
      _
    $region9: #{tpu_custom_call.1} parent=1 // pred_fallthru
      _
    // Predicated region
    $region10: #{tpu_custom_call.1} parent=1 // pred_check
      _
    $region11: #{tpu_custom_call.1} parent=1 // pred_check_branch
      %16 = sbr.rel (0) target = $region13
    $region12: #{tpu_custom_call.1} parent=1 // pred_region
      _
    $region13: #{tpu_custom_call.1} parent=1 // pred_fallthru
      _
    // Predicated region
    $region14: #{tpu_custom_call.1} parent=1 // pred_check
      _
    $region15: #{tpu_custom_call.1} parent=1 // pred_check_branch
      %18 = sbr.rel (0) target = $region17
    $region16: #{tpu_custom_call.1} parent=1 // pred_region
      _
    $region17: #{tpu_custom_call.1} parent=1 // pred_fallthru
      _
    // Predicated region
    $region18: #{tpu_custom_call.1} parent=1 // pred_check
      _
    $region19: #{tpu_custom_call.1} parent=1 // pred_check_branch
      %20 = sbr.rel (0) target = $region21
    $region20: #{tpu_custom_call.1} parent=1 // pred_region
      _
    $region21: #{tpu_custom_call.1} parent=1 // pred_fallthru
      _
    %v22 = vld [vmem:[%s0] sm:$0x3]
    %v23 = vld [vmem:[%s1] sm:$0xff]
    %v24 = vld [vmem:[%s1 + $0x8] sm:$0xff]
    %v25 = vld [vmem:[%s1 + $0x10] sm:$0xff]
    %v26 = vld [vmem:[%s1 + $0x18] sm:$0xff]
    %v27 = vld [vmem:[%s1 + $0x20] sm:$0xff]
    %v28 = vld [vmem:[%s1 + $0x28] sm:$0xff]
    %v29 = vld [vmem:[%s1 + $0x30] sm:$0xff]
    %v30 = vld [vmem:[%s1 + $0x38] sm:$0xff]
    %v31 = vld [vmem:[%s1 + $0x40] sm:$0xff]
    %v32 = vld [vmem:[%s1 + $0x48] sm:$0xff]
    %v33 = vld [vmem:[%s1 + $0x50] sm:$0xff]
    %v34 = vld [vmem:[%s1 + $0x58] sm:$0xf]
    %v35 = vld [vmem:[%s1 + $0x5c] sm:$0xff]
    %v36 = vld [vmem:[%s1 + $0x64] sm:$0xff]
    %v37 = vld [vmem:[%s1 + $0x6c] sm:$0xff]
    %v38 = vld [vmem:[%s1 + $0x74] sm:$0xff]
    %v39 = vld [vmem:[%s1 + $0x7c] sm:$0xff]
    %v40 = vld [vmem:[%s1 + $0x84] sm:$0xff]
    %v41 = vld [vmem:[%s1 + $0x8c] sm:$0xff]
    %v42 = vld [vmem:[%s1 + $0x94] sm:$0xff]
    %v43 = vld [vmem:[%s1 + $0x9c] sm:$0xff]
    %v44 = vld [vmem:[%s1 + $0xa4] sm:$0xff]
    %v45 = vld [vmem:[%s1 + $0xac] sm:$0xff]
    %v46 = vld [vmem:[%s1 + $0xb4] sm:$0xf]
    %v47 = vld [vmem:[%s1 + $0xb8] sm:$0xff]
    %v48 = vld [vmem:[%s1 + $0xc0] sm:$0xff]
    %v49 = vld [vmem:[%s1 + $0xc8] sm:$0xff]
    %v50 = vld [vmem:[%s1 + $0xd0] sm:$0xff]
    %v51 = vld [vmem:[%s1 + $0xd8] sm:$0xff]
    %v52 = vld [vmem:[%s1 + $0xe0] sm:$0xff]
    %v53 = vld [vmem:[%s1 + $0xe8] sm:$0xff]
    %v54 = vld [vmem:[%s1 + $0xf0] sm:$0xff]
    %v55 = vld [vmem:[%s1 + $0xf8] sm:$0xff]
    %v56 = vld [vmem:[%s1 + $0x100] sm:$0xff]
    %v57 = vld [vmem:[%s1 + $0x108] sm:$0xff]
    %v58 = vld [vmem:[%s1 + $0x110] sm:$0xf]
    %v59 = vld [vmem:[%s1 + $0x114] sm:$0xff]
    %v60 = vld [vmem:[%s1 + $0x11c] sm:$0xff]
    %v61 = vld [vmem:[%s1 + $0x124] sm:$0xff]
    %v62 = vld [vmem:[%s1 + $0x12c] sm:$0xff]
    %v63 = vld [vmem:[%s1 + $0x134] sm:$0xff]
    %v64 = vld [vmem:[%s1 + $0x13c] sm:$0xff]
    %v65 = vld [vmem:[%s1 + $0x144] sm:$0xff]
    %v66 = vld [vmem:[%s1 + $0x14c] sm:$0xff]
    %v67 = vld [vmem:[%s1 + $0x154] sm:$0xff]
    %v68 = vld [vmem:[%s1 + $0x15c] sm:$0xff]
    %v69 = vld [vmem:[%s1 + $0x164] sm:$0xff]
    %v70 = vld [vmem:[%s1 + $0x16c] sm:$0xf]
    %v71 = vld [vmem:[%s1 + $0x170] sm:$0xff]
    %v72 = vld [vmem:[%s1 + $0x178] sm:$0xff]
    %v73 = vld [vmem:[%s1 + $0x180] sm:$0xff]
    %v74 = vld [vmem:[%s1 + $0x188] sm:$0xff]
    %v75 = vld [vmem:[%s1 + $0x190] sm:$0xff]
    %v76 = vld [vmem:[%s1 + $0x198] sm:$0xff]
    %v77 = vld [vmem:[%s1 + $0x1a0] sm:$0xff]
    %v78 = vld [vmem:[%s1 + $0x1a8] sm:$0xff]
    %v79 = vld [vmem:[%s1 + $0x1b0] sm:$0xff]
    %v80 = vld [vmem:[%s1 + $0x1b8] sm:$0xff]
    %v81 = vld [vmem:[%s1 + $0x1c0] sm:$0xff]
    %v82 = vld [vmem:[%s1 + $0x1c8] sm:$0xf]
    %v83 = vld [vmem:[%s1 + $0x1cc] sm:$0xff]
    %v84 = vld [vmem:[%s1 + $0x1d4] sm:$0xff]
    %v85 = vld [vmem:[%s1 + $0x1dc] sm:$0xff]
    %v86 = vld [vmem:[%s1 + $0x1e4] sm:$0xff]
    %v87 = vld [vmem:[%s1 + $0x1ec] sm:$0xff]
    %v88 = vld [vmem:[%s1 + $0x1f4] sm:$0xff]
    %v89 = vld [vmem:[%s1 + $0x1fc] sm:$0xff]
    %v90 = vld [vmem:[%s1 + $0x204] sm:$0xff]
    %v91 = vld [vmem:[%s1 + $0x20c] sm:$0xff]
    %v92 = vld [vmem:[%s1 + $0x214] sm:$0xff]
    %v93 = vld [vmem:[%s1 + $0x21c] sm:$0xff]
    %v94 = vld [vmem:[%s1 + $0x224] sm:$0xf]
    %v95 = vld [vmem:[%s1 + $0x228] sm:$0xff]
    %v96 = vld [vmem:[%s1 + $0x230] sm:$0xff]
    %v97 = vld [vmem:[%s1 + $0x238] sm:$0xff]
    %v98 = vld [vmem:[%s1 + $0x240] sm:$0xff]
    %v99 = vld [vmem:[%s1 + $0x248] sm:$0xff]
    %v100 = vld [vmem:[%s1 + $0x250] sm:$0xff]
    %v101 = vld [vmem:[%s1 + $0x258] sm:$0xff]
    %v102 = vld [vmem:[%s1 + $0x260] sm:$0xff]
    %v103 = vld [vmem:[%s1 + $0x268] sm:$0xff]
    %v104 = vld [vmem:[%s1 + $0x270] sm:$0xff]
    %v105 = vld [vmem:[%s1 + $0x278] sm:$0xff]
    %v106 = vld [vmem:[%s1 + $0x280] sm:$0xf]
    %v107 = vld [vmem:[%s1 + $0x284] sm:$0xff]
    %v108 = vld [vmem:[%s1 + $0x28c] sm:$0xff]
    %v109 = vld [vmem:[%s1 + $0x294] sm:$0xff]
    %v110 = vld [vmem:[%s1 + $0x29c] sm:$0xff]
    %v111 = vld [vmem:[%s1 + $0x2a4] sm:$0xff]
    %v112 = vld [vmem:[%s1 + $0x2ac] sm:$0xff]
    %v113 = vld [vmem:[%s1 + $0x2b4] sm:$0xff]
    %v114 = vld [vmem:[%s1 + $0x2bc] sm:$0xff]
    %v115 = vld [vmem:[%s1 + $0x2c4] sm:$0xff]
    %v116 = vld [vmem:[%s1 + $0x2cc] sm:$0xff]
    %v117 = vld [vmem:[%s1 + $0x2d4] sm:$0xff]
    %v118 = vld [vmem:[%s1 + $0x2dc] sm:$0xf]
    %v119 = vld [vmem:[%s1 + $0x2e0] sm:$0xff]
    %v120 = vld [vmem:[%s1 + $0x2e8] sm:$0xff]
    %v121 = vld [vmem:[%s1 + $0x2f0] sm:$0xff]
    %v122 = vld [vmem:[%s1 + $0x2f8] sm:$0xff]
    %v123 = vld [vmem:[%s1 + $0x300] sm:$0xff]
    %v124 = vld [vmem:[%s1 + $0x308] sm:$0xff]
    %v125 = vld [vmem:[%s1 + $0x310] sm:$0xff]
    %v126 = vld [vmem:[%s1 + $0x318] sm:$0xff]
    %v127 = vld [vmem:[%s1 + $0x320] sm:$0xff]
    %v128 = vld [vmem:[%s1 + $0x328] sm:$0xff]
    %v129 = vld [vmem:[%s1 + $0x330] sm:$0xff]
    %v130 = vld [vmem:[%s1 + $0x338] sm:$0xf]
    %v131 = vld [vmem:[%s1 + $0x33c] sm:$0xff]
    %v132 = vld [vmem:[%s1 + $0x344] sm:$0xff]
    %v133 = vld [vmem:[%s1 + $0x34c] sm:$0xff]
    %v134 = vld [vmem:[%s1 + $0x354] sm:$0xff]
    %v135 = vld [vmem:[%s1 + $0x35c] sm:$0xff]
    %v136 = vld [vmem:[%s1 + $0x364] sm:$0xff]
    %v137 = vld [vmem:[%s1 + $0x36c] sm:$0xff]
    %v138 = vld [vmem:[%s1 + $0x374] sm:$0xff]
    %v139 = vld [vmem:[%s1 + $0x37c] sm:$0xff]
    %v140 = vld [vmem:[%s1 + $0x384] sm:$0xff]
    %v141 = vld [vmem:[%s1 + $0x38c] sm:$0xff]
    %v142 = vld [vmem:[%s1 + $0x394] sm:$0xf]
    %v143 = vld [vmem:[%s1 + $0x398] sm:$0xff]
    %v144 = vld [vmem:[%s1 + $0x3a0] sm:$0xff]
    %v145 = vld [vmem:[%s1 + $0x3a8] sm:$0xff]
    %v146 = vld [vmem:[%s1 + $0x3b0] sm:$0xff]
    %v147 = vld [vmem:[%s1 + $0x3b8] sm:$0xff]
    %v148 = vld [vmem:[%s1 + $0x3c0] sm:$0xff]
    %v149 = vld [vmem:[%s1 + $0x3c8] sm:$0xff]
    %v150 = vld [vmem:[%s1 + $0x3d0] sm:$0xff]
    %v151 = vld [vmem:[%s1 + $0x3d8] sm:$0xff]
    %v152 = vld [vmem:[%s1 + $0x3e0] sm:$0xff]
    %v153 = vld [vmem:[%s1 + $0x3e8] sm:$0xff]
    %v154 = vld [vmem:[%s1 + $0x3f0] sm:$0xf]
    %v155 = vld [vmem:[%s1 + $0x3f4] sm:$0xff]
    %v156 = vld [vmem:[%s1 + $0x3fc] sm:$0xff]
    %v157 = vld [vmem:[%s1 + $0x404] sm:$0xff]
    %v158 = vld [vmem:[%s1 + $0x40c] sm:$0xff]
    %v159 = vld [vmem:[%s1 + $0x414] sm:$0xff]
    %v160 = vld [vmem:[%s1 + $0x41c] sm:$0xff]
    %v161 = vld [vmem:[%s1 + $0x424] sm:$0xff]
    %v162 = vld [vmem:[%s1 + $0x42c] sm:$0xff]
    %v163 = vld [vmem:[%s1 + $0x434] sm:$0xff]
    %v164 = vld [vmem:[%s1 + $0x43c] sm:$0xff]
    %v165 = vld [vmem:[%s1 + $0x444] sm:$0xff]
    %v166 = vld [vmem:[%s1 + $0x44c] sm:$0xf]
    %v167 = vld [vmem:[%s1 + $0x450] sm:$0xff]
    %v168 = vld [vmem:[%s1 + $0x458] sm:$0xff]
    %v169 = vld [vmem:[%s1 + $0x460] sm:$0xff]
    %v170 = vld [vmem:[%s1 + $0x468] sm:$0xff]
    %v171 = vld [vmem:[%s1 + $0x470] sm:$0xff]
    %v172 = vld [vmem:[%s1 + $0x478] sm:$0xff]
    %v173 = vld [vmem:[%s1 + $0x480] sm:$0xff]
    %v174 = vld [vmem:[%s1 + $0x488] sm:$0xff]
    %v175 = vld [vmem:[%s1 + $0x490] sm:$0xff]
    %v176 = vld [vmem:[%s1 + $0x498] sm:$0xff]
    %v177 = vld [vmem:[%s1 + $0x4a0] sm:$0xff]
    %v178 = vld [vmem:[%s1 + $0x4a8] sm:$0xf]
    %v179 = vld [vmem:[%s1 + $0x4ac] sm:$0xff]
    %v180 = vld [vmem:[%s1 + $0x4b4] sm:$0xff]
    %v181 = vld [vmem:[%s1 + $0x4bc] sm:$0xff]
    %v182 = vld [vmem:[%s1 + $0x4c4] sm:$0xff]
    %v183 = vld [vmem:[%s1 + $0x4cc] sm:$0xff]
    %v184 = vld [vmem:[%s1 + $0x4d4] sm:$0xff]
    %v185 = vld [vmem:[%s1 + $0x4dc] sm:$0xff]
    %v186 = vld [vmem:[%s1 + $0x4e4] sm:$0xff]
    %v187 = vld [vmem:[%s1 + $0x4ec] sm:$0xff]
    %v188 = vld [vmem:[%s1 + $0x4f4] sm:$0xff]
    %v189 = vld [vmem:[%s1 + $0x4fc] sm:$0xff]
    %v190 = vld [vmem:[%s1 + $0x504] sm:$0xf]
    %v191 = vld [vmem:[%s1 + $0x508] sm:$0xff]
    %v192 = vld [vmem:[%s1 + $0x510] sm:$0xff]
    %v193 = vld [vmem:[%s1 + $0x518] sm:$0xff]
    %v194 = vld [vmem:[%s1 + $0x520] sm:$0xff]
    %v195 = vld [vmem:[%s1 + $0x528] sm:$0xff]
    %v196 = vld [vmem:[%s1 + $0x530] sm:$0xff]
    %v197 = vld [vmem:[%s1 + $0x538] sm:$0xff]
    %v198 = vld [vmem:[%s1 + $0x540] sm:$0xff]
    %v199 = vld [vmem:[%s1 + $0x548] sm:$0xff]
    %v200 = vld [vmem:[%s1 + $0x550] sm:$0xff]
    %v201 = vld [vmem:[%s1 + $0x558] sm:$0xff]
    %v202 = vld [vmem:[%s1 + $0x560] sm:$0xf]
    %v203 = vld [vmem:[%s1 + $0x564] sm:$0xff]
    %v204 = vld [vmem:[%s1 + $0x56c] sm:$0xff]
    %v205 = vld [vmem:[%s1 + $0x574] sm:$0xff]
    %v206 = vld [vmem:[%s1 + $0x57c] sm:$0xff]
    %v207 = vld [vmem:[%s1 + $0x584] sm:$0xff]
    %v208 = vld [vmem:[%s1 + $0x58c] sm:$0xff]
    %v209 = vld [vmem:[%s1 + $0x594] sm:$0xff]
    %v210 = vld [vmem:[%s1 + $0x59c] sm:$0xff]
    %v211 = vld [vmem:[%s1 + $0x5a4] sm:$0xff]
    %v212 = vld [vmem:[%s1 + $0x5ac] sm:$0xff]
    %v213 = vld [vmem:[%s1 + $0x5b4] sm:$0xff]
    %v214 = vld [vmem:[%s1 + $0x5bc] sm:$0xf]
    %v215 = vld [vmem:[%s1 + $0x5c0] sm:$0xff]
    %v216 = vld [vmem:[%s1 + $0x5c8] sm:$0xff]
    %v217 = vld [vmem:[%s1 + $0x5d0] sm:$0xff]
    %v218 = vld [vmem:[%s1 + $0x5d8] sm:$0xff]
    %v219 = vld [vmem:[%s1 + $0x5e0] sm:$0xff]
    %v220 = vld [vmem:[%s1 + $0x5e8] sm:$0xff]
    %v221 = vld [vmem:[%s1 + $0x5f0] sm:$0xff]
    %v222 = vld [vmem:[%s1 + $0x5f8] sm:$0xff]
    %v223 = vld [vmem:[%s1 + $0x600] sm:$0xff]
    %v224 = vld [vmem:[%s1 + $0x608] sm:$0xff]
    %v225 = vld [vmem:[%s1 + $0x610] sm:$0xff]
    %v226 = vld [vmem:[%s1 + $0x618] sm:$0xf]
    %v227 = vld [vmem:[%s1 + $0x61c] sm:$0xff]
    %v228 = vld [vmem:[%s1 + $0x624] sm:$0xff]
    %v229 = vld [vmem:[%s1 + $0x62c] sm:$0xff]
    %v230 = vld [vmem:[%s1 + $0x634] sm:$0xff]
    %v231 = vld [vmem:[%s1 + $0x63c] sm:$0xff]
    %v232 = vld [vmem:[%s1 + $0x644] sm:$0xff]
    %v233 = vld [vmem:[%s1 + $0x64c] sm:$0xff]
    %v234 = vld [vmem:[%s1 + $0x654] sm:$0xff]
    %v235 = vld [vmem:[%s1 + $0x65c] sm:$0xff]
    %v236 = vld [vmem:[%s1 + $0x664] sm:$0xff]
    %v237 = vld [vmem:[%s1 + $0x66c] sm:$0xff]
    %v238 = vld [vmem:[%s1 + $0x674] sm:$0xf]
    %v239 = vld [vmem:[%s1 + $0x678] sm:$0xff]
    %v240 = vld [vmem:[%s1 + $0x680] sm:$0xff]
    %v241 = vld [vmem:[%s1 + $0x688] sm:$0xff]
    %v242 = vld [vmem:[%s1 + $0x690] sm:$0xff]
    %v243 = vld [vmem:[%s1 + $0x698] sm:$0xff]
    %v244 = vld [vmem:[%s1 + $0x6a0] sm:$0xff]
    %v245 = vld [vmem:[%s1 + $0x6a8] sm:$0xff]
    %v246 = vld [vmem:[%s1 + $0x6b0] sm:$0xff]
    %v247 = vld [vmem:[%s1 + $0x6b8] sm:$0xff]
    %v248 = vld [vmem:[%s1 + $0x6c0] sm:$0xff]
    %v249 = vld [vmem:[%s1 + $0x6c8] sm:$0xff]
    %v250 = vld [vmem:[%s1 + $0x6d0] sm:$0xf]
    %v251 = vld [vmem:[%s1 + $0x6d4] sm:$0xff]
    %v252 = vld [vmem:[%s1 + $0x6dc] sm:$0xff]
    %v253 = vld [vmem:[%s1 + $0x6e4] sm:$0xff]
    %v254 = vld [vmem:[%s1 + $0x6ec] sm:$0xff]
    %v255 = vld [vmem:[%s1 + $0x6f4] sm:$0xff]
    %v256 = vld [vmem:[%s1 + $0x6fc] sm:$0xff]
    %v257 = vld [vmem:[%s1 + $0x704] sm:$0xff]
    %v258 = vld [vmem:[%s1 + $0x70c] sm:$0xff]
    %v259 = vld [vmem:[%s1 + $0x714] sm:$0xff]
    %v260 = vld [vmem:[%s1 + $0x71c] sm:$0xff]
    %v261 = vld [vmem:[%s1 + $0x724] sm:$0xff]
    %v262 = vld [vmem:[%s1 + $0x72c] sm:$0xf]
    %v263 = vld [vmem:[%s2] sm:$0xff]
    %v264 = vld [vmem:[%s2 + $0x8] sm:$0xff]
    %v265 = vld [vmem:[%s2 + $0x10] sm:$0xff]
    %v269 = vlaneseq
    %v270 = vshrl.u32 %v269, 7
    %v271 = vsub.s32 0, %v270
    %v272 = vrot.slane %v263, %v271
    %v273 = vlaneseq
    %v274 = vshrl.u32 %v273, 7
    %v275 = vsub.s32 1, %v274
    %v276 = vrot.slane %v263, %v275
    %v277 = vlaneseq
    %v278 = vshrl.u32 %v277, 7
    %v279 = vsub.s32 2, %v278
    %v280 = vrot.slane %v263, %v279
    %v281 = vlaneseq
    %v282 = vshrl.u32 %v281, 7
    %v283 = vsub.s32 3, %v282
    %v284 = vrot.slane %v263, %v283
    %v285 = vlaneseq
    %v286 = vshrl.u32 %v285, 7
    %v287 = vsub.s32 4, %v286
    %v288 = vrot.slane %v263, %v287
    %v289 = vlaneseq
    %v290 = vshrl.u32 %v289, 7
    %v291 = vsub.s32 5, %v290
    %v292 = vrot.slane %v263, %v291
    %v293 = vlaneseq
    %v294 = vshrl.u32 %v293, 7
    %v295 = vsub.s32 6, %v294
    %v296 = vrot.slane %v263, %v295
    %v297 = vlaneseq
    %v298 = vshrl.u32 %v297, 7
    %v299 = vsub.s32 7, %v298
    %v300 = vrot.slane %v263, %v299
    %v301 = vlaneseq
    %v302 = vshrl.u32 %v301, 7
    %v303 = vsub.s32 0, %v302
    %v304 = vrot.slane %v264, %v303
    %v305 = vlaneseq
    %v306 = vshrl.u32 %v305, 7
    %v307 = vsub.s32 1, %v306
    %v308 = vrot.slane %v264, %v307
    %v309 = vlaneseq
    %v310 = vshrl.u32 %v309, 7
    %v311 = vsub.s32 2, %v310
    %v312 = vrot.slane %v264, %v311
    %v313 = vlaneseq
    %v314 = vshrl.u32 %v313, 7
    %v315 = vsub.s32 3, %v314
    %v316 = vrot.slane %v264, %v315
    %v317 = vlaneseq
    %v318 = vshrl.u32 %v317, 7
    %v319 = vsub.s32 4, %v318
    %v320 = vrot.slane %v264, %v319
    %v321 = vlaneseq
    %v322 = vshrl.u32 %v321, 7
    %v323 = vsub.s32 5, %v322
    %v324 = vrot.slane %v264, %v323
    %v325 = vlaneseq
    %v326 = vshrl.u32 %v325, 7
    %v327 = vsub.s32 6, %v326
    %v328 = vrot.slane %v264, %v327
    %v329 = vlaneseq
    %v330 = vshrl.u32 %v329, 7
    %v331 = vsub.s32 7, %v330
    %v332 = vrot.slane %v264, %v331
    %v333 = vlaneseq
    %v334 = vshrl.u32 %v333, 7
    %v335 = vsub.s32 0, %v334
    %v336 = vrot.slane %v265, %v335
    %v337 = vlaneseq
    %v338 = vshrl.u32 %v337, 7
    %v339 = vsub.s32 1, %v338
    %v340 = vrot.slane %v265, %v339
    %v341 = vlaneseq
    %v342 = vshrl.u32 %v341, 7
    %v343 = vsub.s32 2, %v342
    %v344 = vrot.slane %v265, %v343
    %v345 = vlaneseq
    %v346 = vshrl.u32 %v345, 7
    %v347 = vsub.s32 3, %v346
    %v348 = vrot.slane %v265, %v347
    %v349 = vlaneseq
    %v350 = vshrl.u32 %v349, 7
    %v351 = vsub.s32 4, %v350
    %v352 = vrot.slane %v265, %v351
    %v353 = vlaneseq
    %v354 = vshrl.u32 %v353, 7
    %v355 = vsub.s32 5, %v354
    %v356 = vrot.slane %v265, %v355
    %v357 = vlaneseq
    %v358 = vshrl.u32 %v357, 7
    %v359 = vsub.s32 6, %v358
    %v360 = vrot.slane %v265, %v359
    %v386 = vunpack.c.l.s4 1966171168
    %v387 = vunpack.c.0.s8 %v386
    %v388 = vlaneseq
    %v389 = vshrl.u32 %v388, 7
    %v390 = vsub.s32 %v387, %v389
    %v391 = vrot.slane %v22, %v390
    %v392 = vcombine.high %v391, %v391
    %v394 = vunpack.c.l.s4 1966171168
    %v395 = vunpack.c.0.s8 %v394
    %v396 = vlaneseq
    %v397 = vshrl.u32 %v396, 7
    %v398 = vsub.s32 %v395, %v397
    %v399 = vrot.slane %v391, %v398
    %v401 = vunpack.c.l.s4 1966171168
    %v402 = vunpack.c.0.s8 %v401
    %v403 = vlaneseq
    %v404 = vshrl.u32 %v403, 7
    %v405 = vsub.s32 %v402, %v404
    %v406 = vrot.slane %v392, %v405
    %v648 = vunpack.c.l.b16 %v23
    %v649 = vunpack.c.h.b16 %v23
    %v650 = vunpack.c.l.b16 %v24
    %v651 = vunpack.c.h.b16 %v24
    %v652 = vunpack.c.l.b16 %v25
    %v653 = vunpack.c.h.b16 %v25
    %v654 = vunpack.c.l.b16 %v26
    %v655 = vunpack.c.h.b16 %v26
    %v656 = vunpack.c.l.b16 %v27
    %v657 = vunpack.c.h.b16 %v27
    %v658 = vunpack.c.l.b16 %v28
    %v659 = vunpack.c.h.b16 %v28
    %v660 = vunpack.c.l.b16 %v29
    %v661 = vunpack.c.h.b16 %v29
    %v662 = vunpack.c.l.b16 %v30
    %v663 = vunpack.c.h.b16 %v30
    %v664 = vunpack.c.l.b16 %v31
    %v665 = vunpack.c.h.b16 %v31
    %v666 = vunpack.c.l.b16 %v32
    %v667 = vunpack.c.h.b16 %v32
    %v668 = vunpack.c.l.b16 %v33
    %v669 = vunpack.c.h.b16 %v33
    %v670 = vunpack.c.l.b16 %v34
    %v671 = vunpack.c.l.b16 %v35
    %v672 = vunpack.c.h.b16 %v35
    %v673 = vunpack.c.l.b16 %v36
    %v674 = vunpack.c.h.b16 %v36
    %v675 = vunpack.c.l.b16 %v37
    %v676 = vunpack.c.h.b16 %v37
    %v677 = vunpack.c.l.b16 %v38
    %v678 = vunpack.c.h.b16 %v38
    %v679 = vunpack.c.l.b16 %v39
    %v680 = vunpack.c.h.b16 %v39
    %v681 = vunpack.c.l.b16 %v40
    %v682 = vunpack.c.h.b16 %v40
    %v683 = vunpack.c.l.b16 %v41
    %v684 = vunpack.c.h.b16 %v41
    %v685 = vunpack.c.l.b16 %v42
    %v686 = vunpack.c.h.b16 %v42
    %v687 = vunpack.c.l.b16 %v43
    %v688 = vunpack.c.h.b16 %v43
    %v689 = vunpack.c.l.b16 %v44
    %v690 = vunpack.c.h.b16 %v44
    %v691 = vunpack.c.l.b16 %v45
    %v692 = vunpack.c.h.b16 %v45
    %v693 = vunpack.c.l.b16 %v46
    %v694 = vunpack.c.l.b16 %v47
    %v695 = vunpack.c.h.b16 %v47
    %v696 = vunpack.c.l.b16 %v48
    %v697 = vunpack.c.h.b16 %v48
    %v698 = vunpack.c.l.b16 %v49
    %v699 = vunpack.c.h.b16 %v49
    %v700 = vunpack.c.l.b16 %v50
    %v701 = vunpack.c.h.b16 %v50
    %v702 = vunpack.c.l.b16 %v51
    %v703 = vunpack.c.h.b16 %v51
    %v704 = vunpack.c.l.b16 %v52
    %v705 = vunpack.c.h.b16 %v52
    %v706 = vunpack.c.l.b16 %v53
    %v707 = vunpack.c.h.b16 %v53
    %v708 = vunpack.c.l.b16 %v54
    %v709 = vunpack.c.h.b16 %v54
    %v710 = vunpack.c.l.b16 %v55
    %v711 = vunpack.c.h.b16 %v55
    %v712 = vunpack.c.l.b16 %v56
    %v713 = vunpack.c.h.b16 %v56
    %v714 = vunpack.c.l.b16 %v57
    %v715 = vunpack.c.h.b16 %v57
    %v716 = vunpack.c.l.b16 %v58
    %v717 = vunpack.c.l.b16 %v59
    %v718 = vunpack.c.h.b16 %v59
    %v719 = vunpack.c.l.b16 %v60
    %v720 = vunpack.c.h.b16 %v60
    %v721 = vunpack.c.l.b16 %v61
    %v722 = vunpack.c.h.b16 %v61
    %v723 = vunpack.c.l.b16 %v62
    %v724 = vunpack.c.h.b16 %v62
    %v725 = vunpack.c.l.b16 %v63
    %v726 = vunpack.c.h.b16 %v63
    %v727 = vunpack.c.l.b16 %v64
    %v728 = vunpack.c.h.b16 %v64
    %v729 = vunpack.c.l.b16 %v65
    %v730 = vunpack.c.h.b16 %v65
    %v731 = vunpack.c.l.b16 %v66
    %v732 = vunpack.c.h.b16 %v66
    %v733 = vunpack.c.l.b16 %v67
    %v734 = vunpack.c.h.b16 %v67
    %v735 = vunpack.c.l.b16 %v68
    %v736 = vunpack.c.h.b16 %v68
    %v737 = vunpack.c.l.b16 %v69
    %v738 = vunpack.c.h.b16 %v69
    %v739 = vunpack.c.l.b16 %v70
    %v740 = vunpack.c.l.b16 %v71
    %v741 = vunpack.c.h.b16 %v71
    %v742 = vunpack.c.l.b16 %v72
    %v743 = vunpack.c.h.b16 %v72
    %v744 = vunpack.c.l.b16 %v73
    %v745 = vunpack.c.h.b16 %v73
    %v746 = vunpack.c.l.b16 %v74
    %v747 = vunpack.c.h.b16 %v74
    %v748 = vunpack.c.l.b16 %v75
    %v749 = vunpack.c.h.b16 %v75
    %v750 = vunpack.c.l.b16 %v76
    %v751 = vunpack.c.h.b16 %v76
    %v752 = vunpack.c.l.b16 %v77
    %v753 = vunpack.c.h.b16 %v77
    %v754 = vunpack.c.l.b16 %v78
    %v755 = vunpack.c.h.b16 %v78
    %v756 = vunpack.c.l.b16 %v79
    %v757 = vunpack.c.h.b16 %v79
    %v758 = vunpack.c.l.b16 %v80
    %v759 = vunpack.c.h.b16 %v80
    %v760 = vunpack.c.l.b16 %v81
    %v761 = vunpack.c.h.b16 %v81
    %v762 = vunpack.c.l.b16 %v82
    %v763 = vunpack.c.l.b16 %v83
    %v764 = vunpack.c.h.b16 %v83
    %v765 = vunpack.c.l.b16 %v84
    %v766 = vunpack.c.h.b16 %v84
    %v767 = vunpack.c.l.b16 %v85
    %v768 = vunpack.c.h.b16 %v85
    %v769 = vunpack.c.l.b16 %v86
    %v770 = vunpack.c.h.b16 %v86
    %v771 = vunpack.c.l.b16 %v87
    %v772 = vunpack.c.h.b16 %v87
    %v773 = vunpack.c.l.b16 %v88
    %v774 = vunpack.c.h.b16 %v88
    %v775 = vunpack.c.l.b16 %v89
    %v776 = vunpack.c.h.b16 %v89
    %v777 = vunpack.c.l.b16 %v90
    %v778 = vunpack.c.h.b16 %v90
    %v779 = vunpack.c.l.b16 %v91
    %v780 = vunpack.c.h.b16 %v91
    %v781 = vunpack.c.l.b16 %v92
    %v782 = vunpack.c.h.b16 %v92
    %v783 = vunpack.c.l.b16 %v93
    %v784 = vunpack.c.h.b16 %v93
    %v785 = vunpack.c.l.b16 %v94
    %v786 = vunpack.c.l.b16 %v95
    %v787 = vunpack.c.h.b16 %v95
    %v788 = vunpack.c.l.b16 %v96
    %v789 = vunpack.c.h.b16 %v96
    %v790 = vunpack.c.l.b16 %v97
    %v791 = vunpack.c.h.b16 %v97
    %v792 = vunpack.c.l.b16 %v98
    %v793 = vunpack.c.h.b16 %v98
    %v794 = vunpack.c.l.b16 %v99
    %v795 = vunpack.c.h.b16 %v99
    %v796 = vunpack.c.l.b16 %v100
    %v797 = vunpack.c.h.b16 %v100
    %v798 = vunpack.c.l.b16 %v101
    %v799 = vunpack.c.h.b16 %v101
    %v800 = vunpack.c.l.b16 %v102
    %v801 = vunpack.c.h.b16 %v102
    %v802 = vunpack.c.l.b16 %v103
    %v803 = vunpack.c.h.b16 %v103
    %v804 = vunpack.c.l.b16 %v104
    %v805 = vunpack.c.h.b16 %v104
    %v806 = vunpack.c.l.b16 %v105
    %v807 = vunpack.c.h.b16 %v105
    %v808 = vunpack.c.l.b16 %v106
    %v809 = vunpack.c.l.b16 %v107
    %v810 = vunpack.c.h.b16 %v107
    %v811 = vunpack.c.l.b16 %v108
    %v812 = vunpack.c.h.b16 %v108
    %v813 = vunpack.c.l.b16 %v109
    %v814 = vunpack.c.h.b16 %v109
    %v815 = vunpack.c.l.b16 %v110
    %v816 = vunpack.c.h.b16 %v110
    %v817 = vunpack.c.l.b16 %v111
    %v818 = vunpack.c.h.b16 %v111
    %v819 = vunpack.c.l.b16 %v112
    %v820 = vunpack.c.h.b16 %v112
    %v821 = vunpack.c.l.b16 %v113
    %v822 = vunpack.c.h.b16 %v113
    %v823 = vunpack.c.l.b16 %v114
    %v824 = vunpack.c.h.b16 %v114
    %v825 = vunpack.c.l.b16 %v115
    %v826 = vunpack.c.h.b16 %v115
    %v827 = vunpack.c.l.b16 %v116
    %v828 = vunpack.c.h.b16 %v116
    %v829 = vunpack.c.l.b16 %v117
    %v830 = vunpack.c.h.b16 %v117
    %v831 = vunpack.c.l.b16 %v118
    %v832 = vunpack.c.l.b16 %v119
    %v833 = vunpack.c.h.b16 %v119
    %v834 = vunpack.c.l.b16 %v120
    %v835 = vunpack.c.h.b16 %v120
    %v836 = vunpack.c.l.b16 %v121
    %v837 = vunpack.c.h.b16 %v121
    %v838 = vunpack.c.l.b16 %v122
    %v839 = vunpack.c.h.b16 %v122
    %v840 = vunpack.c.l.b16 %v123
    %v841 = vunpack.c.h.b16 %v123
    %v842 = vunpack.c.l.b16 %v124
    %v843 = vunpack.c.h.b16 %v124
    %v844 = vunpack.c.l.b16 %v125
    %v845 = vunpack.c.h.b16 %v125
    %v846 = vunpack.c.l.b16 %v126
    %v847 = vunpack.c.h.b16 %v126
    %v848 = vunpack.c.l.b16 %v127
    %v849 = vunpack.c.h.b16 %v127
    %v850 = vunpack.c.l.b16 %v128
    %v851 = vunpack.c.h.b16 %v128
    %v852 = vunpack.c.l.b16 %v129
    %v853 = vunpack.c.h.b16 %v129
    %v854 = vunpack.c.l.b16 %v130
    %v855 = vunpack.c.l.b16 %v131
    %v856 = vunpack.c.h.b16 %v131
    %v857 = vunpack.c.l.b16 %v132
    %v858 = vunpack.c.h.b16 %v132
    %v859 = vunpack.c.l.b16 %v133
    %v860 = vunpack.c.h.b16 %v133
    %v861 = vunpack.c.l.b16 %v134
    %v862 = vunpack.c.h.b16 %v134
    %v863 = vunpack.c.l.b16 %v135
    %v864 = vunpack.c.h.b16 %v135
    %v865 = vunpack.c.l.b16 %v136
    %v866 = vunpack.c.h.b16 %v136
    %v867 = vunpack.c.l.b16 %v137
    %v868 = vunpack.c.h.b16 %v137
    %v869 = vunpack.c.l.b16 %v138
    %v870 = vunpack.c.h.b16 %v138
    %v871 = vunpack.c.l.b16 %v139
    %v872 = vunpack.c.h.b16 %v139
    %v873 = vunpack.c.l.b16 %v140
    %v874 = vunpack.c.h.b16 %v140
    %v875 = vunpack.c.l.b16 %v141
    %v876 = vunpack.c.h.b16 %v141
    %v877 = vunpack.c.l.b16 %v142
    %v878 = vunpack.c.l.b16 %v143
    %v879 = vunpack.c.h.b16 %v143
    %v880 = vunpack.c.l.b16 %v144
    %v881 = vunpack.c.h.b16 %v144
    %v882 = vunpack.c.l.b16 %v145
    %v883 = vunpack.c.h.b16 %v145
    %v884 = vunpack.c.l.b16 %v146
    %v885 = vunpack.c.h.b16 %v146
    %v886 = vunpack.c.l.b16 %v147
    %v887 = vunpack.c.h.b16 %v147
    %v888 = vunpack.c.l.b16 %v148
    %v889 = vunpack.c.h.b16 %v148
    %v890 = vunpack.c.l.b16 %v149
    %v891 = vunpack.c.h.b16 %v149
    %v892 = vunpack.c.l.b16 %v150
    %v893 = vunpack.c.h.b16 %v150
    %v894 = vunpack.c.l.b16 %v151
    %v895 = vunpack.c.h.b16 %v151
    %v896 = vunpack.c.l.b16 %v152
    %v897 = vunpack.c.h.b16 %v152
    %v898 = vunpack.c.l.b16 %v153
    %v899 = vunpack.c.h.b16 %v153
    %v900 = vunpack.c.l.b16 %v154
    %v901 = vunpack.c.l.b16 %v155
    %v902 = vunpack.c.h.b16 %v155
    %v903 = vunpack.c.l.b16 %v156
    %v904 = vunpack.c.h.b16 %v156
    %v905 = vunpack.c.l.b16 %v157
    %v906 = vunpack.c.h.b16 %v157
    %v907 = vunpack.c.l.b16 %v158
    %v908 = vunpack.c.h.b16 %v158
    %v909 = vunpack.c.l.b16 %v159
    %v910 = vunpack.c.h.b16 %v159
    %v911 = vunpack.c.l.b16 %v160
    %v912 = vunpack.c.h.b16 %v160
    %v913 = vunpack.c.l.b16 %v161
    %v914 = vunpack.c.h.b16 %v161
    %v915 = vunpack.c.l.b16 %v162
    %v916 = vunpack.c.h.b16 %v162
    %v917 = vunpack.c.l.b16 %v163
    %v918 = vunpack.c.h.b16 %v163
    %v919 = vunpack.c.l.b16 %v164
    %v920 = vunpack.c.h.b16 %v164
    %v921 = vunpack.c.l.b16 %v165
    %v922 = vunpack.c.h.b16 %v165
    %v923 = vunpack.c.l.b16 %v166
    %v924 = vunpack.c.l.b16 %v167
    %v925 = vunpack.c.h.b16 %v167
    %v926 = vunpack.c.l.b16 %v168
    %v927 = vunpack.c.h.b16 %v168
    %v928 = vunpack.c.l.b16 %v169
    %v929 = vunpack.c.h.b16 %v169
    %v930 = vunpack.c.l.b16 %v170
    %v931 = vunpack.c.h.b16 %v170
    %v932 = vunpack.c.l.b16 %v171
    %v933 = vunpack.c.h.b16 %v171
    %v934 = vunpack.c.l.b16 %v172
    %v935 = vunpack.c.h.b16 %v172
    %v936 = vunpack.c.l.b16 %v173
    %v937 = vunpack.c.h.b16 %v173
    %v938 = vunpack.c.l.b16 %v174
    %v939 = vunpack.c.h.b16 %v174
    %v940 = vunpack.c.l.b16 %v175
    %v941 = vunpack.c.h.b16 %v175
    %v942 = vunpack.c.l.b16 %v176
    %v943 = vunpack.c.h.b16 %v176
    %v944 = vunpack.c.l.b16 %v177
    %v945 = vunpack.c.h.b16 %v177
    %v946 = vunpack.c.l.b16 %v178
    %v947 = vunpack.c.l.b16 %v179
    %v948 = vunpack.c.h.b16 %v179
    %v949 = vunpack.c.l.b16 %v180
    %v950 = vunpack.c.h.b16 %v180
    %v951 = vunpack.c.l.b16 %v181
    %v952 = vunpack.c.h.b16 %v181
    %v953 = vunpack.c.l.b16 %v182
    %v954 = vunpack.c.h.b16 %v182
    %v955 = vunpack.c.l.b16 %v183
    %v956 = vunpack.c.h.b16 %v183
    %v957 = vunpack.c.l.b16 %v184
    %v958 = vunpack.c.h.b16 %v184
    %v959 = vunpack.c.l.b16 %v185
    %v960 = vunpack.c.h.b16 %v185
    %v961 = vunpack.c.l.b16 %v186
    %v962 = vunpack.c.h.b16 %v186
    %v963 = vunpack.c.l.b16 %v187
    %v964 = vunpack.c.h.b16 %v187
    %v965 = vunpack.c.l.b16 %v188
    %v966 = vunpack.c.h.b16 %v188
    %v967 = vunpack.c.l.b16 %v189
    %v968 = vunpack.c.h.b16 %v189
    %v969 = vunpack.c.l.b16 %v190
    %v970 = vunpack.c.l.b16 %v191
    %v971 = vunpack.c.h.b16 %v191
    %v972 = vunpack.c.l.b16 %v192
    %v973 = vunpack.c.h.b16 %v192
    %v974 = vunpack.c.l.b16 %v193
    %v975 = vunpack.c.h.b16 %v193
    %v976 = vunpack.c.l.b16 %v194
    %v977 = vunpack.c.h.b16 %v194
    %v978 = vunpack.c.l.b16 %v195
    %v979 = vunpack.c.h.b16 %v195
    %v980 = vunpack.c.l.b16 %v196
    %v981 = vunpack.c.h.b16 %v196
    %v982 = vunpack.c.l.b16 %v197
    %v983 = vunpack.c.h.b16 %v197
    %v984 = vunpack.c.l.b16 %v198
    %v985 = vunpack.c.h.b16 %v198
    %v986 = vunpack.c.l.b16 %v199
    %v987 = vunpack.c.h.b16 %v199
    %v988 = vunpack.c.l.b16 %v200
    %v989 = vunpack.c.h.b16 %v200
    %v990 = vunpack.c.l.b16 %v201
    %v991 = vunpack.c.h.b16 %v201
    %v992 = vunpack.c.l.b16 %v202
    %v993 = vunpack.c.l.b16 %v203
    %v994 = vunpack.c.h.b16 %v203
    %v995 = vunpack.c.l.b16 %v204
    %v996 = vunpack.c.h.b16 %v204
    %v997 = vunpack.c.l.b16 %v205
    %v998 = vunpack.c.h.b16 %v205
    %v999 = vunpack.c.l.b16 %v206
    %v1000 = vunpack.c.h.b16 %v206
    %v1001 = vunpack.c.l.b16 %v207
    %v1002 = vunpack.c.h.b16 %v207
    %v1003 = vunpack.c.l.b16 %v208
    %v1004 = vunpack.c.h.b16 %v208
    %v1005 = vunpack.c.l.b16 %v209
    %v1006 = vunpack.c.h.b16 %v209
    %v1007 = vunpack.c.l.b16 %v210
    %v1008 = vunpack.c.h.b16 %v210
    %v1009 = vunpack.c.l.b16 %v211
    %v1010 = vunpack.c.h.b16 %v211
    %v1011 = vunpack.c.l.b16 %v212
    %v1012 = vunpack.c.h.b16 %v212
    %v1013 = vunpack.c.l.b16 %v213
    %v1014 = vunpack.c.h.b16 %v213
    %v1015 = vunpack.c.l.b16 %v214
    %v1016 = vunpack.c.l.b16 %v215
    %v1017 = vunpack.c.h.b16 %v215
    %v1018 = vunpack.c.l.b16 %v216
    %v1019 = vunpack.c.h.b16 %v216
    %v1020 = vunpack.c.l.b16 %v217
    %v1021 = vunpack.c.h.b16 %v217
    %v1022 = vunpack.c.l.b16 %v218
    %v1023 = vunpack.c.h.b16 %v218
    %v1024 = vunpack.c.l.b16 %v219
    %v1025 = vunpack.c.h.b16 %v219
    %v1026 = vunpack.c.l.b16 %v220
    %v1027 = vunpack.c.h.b16 %v220
    %v1028 = vunpack.c.l.b16 %v221
    %v1029 = vunpack.c.h.b16 %v221
    %v1030 = vunpack.c.l.b16 %v222
    %v1031 = vunpack.c.h.b16 %v222
    %v1032 = vunpack.c.l.b16 %v223
    %v1033 = vunpack.c.h.b16 %v223
    %v1034 = vunpack.c.l.b16 %v224
    %v1035 = vunpack.c.h.b16 %v224
    %v1036 = vunpack.c.l.b16 %v225
    %v1037 = vunpack.c.h.b16 %v225
    %v1038 = vunpack.c.l.b16 %v226
    %v1039 = vunpack.c.l.b16 %v227
    %v1040 = vunpack.c.h.b16 %v227
    %v1041 = vunpack.c.l.b16 %v228
    %v1042 = vunpack.c.h.b16 %v228
    %v1043 = vunpack.c.l.b16 %v229
    %v1044 = vunpack.c.h.b16 %v229
    %v1045 = vunpack.c.l.b16 %v230
    %v1046 = vunpack.c.h.b16 %v230
    %v1047 = vunpack.c.l.b16 %v231
    %v1048 = vunpack.c.h.b16 %v231
    %v1049 = vunpack.c.l.b16 %v232
    %v1050 = vunpack.c.h.b16 %v232
    %v1051 = vunpack.c.l.b16 %v233
    %v1052 = vunpack.c.h.b16 %v233
    %v1053 = vunpack.c.l.b16 %v234
    %v1054 = vunpack.c.h.b16 %v234
    %v1055 = vunpack.c.l.b16 %v235
    %v1056 = vunpack.c.h.b16 %v235
    %v1057 = vunpack.c.l.b16 %v236
    %v1058 = vunpack.c.h.b16 %v236
    %v1059 = vunpack.c.l.b16 %v237
    %v1060 = vunpack.c.h.b16 %v237
    %v1061 = vunpack.c.l.b16 %v238
    %v1062 = vunpack.c.l.b16 %v239
    %v1063 = vunpack.c.h.b16 %v239
    %v1064 = vunpack.c.l.b16 %v240
    %v1065 = vunpack.c.h.b16 %v240
    %v1066 = vunpack.c.l.b16 %v241
    %v1067 = vunpack.c.h.b16 %v241
    %v1068 = vunpack.c.l.b16 %v242
    %v1069 = vunpack.c.h.b16 %v242
    %v1070 = vunpack.c.l.b16 %v243
    %v1071 = vunpack.c.h.b16 %v243
    %v1072 = vunpack.c.l.b16 %v244
    %v1073 = vunpack.c.h.b16 %v244
    %v1074 = vunpack.c.l.b16 %v245
    %v1075 = vunpack.c.h.b16 %v245
    %v1076 = vunpack.c.l.b16 %v246
    %v1077 = vunpack.c.h.b16 %v246
    %v1078 = vunpack.c.l.b16 %v247
    %v1079 = vunpack.c.h.b16 %v247
    %v1080 = vunpack.c.l.b16 %v248
    %v1081 = vunpack.c.h.b16 %v248
    %v1082 = vunpack.c.l.b16 %v249
    %v1083 = vunpack.c.h.b16 %v249
    %v1084 = vunpack.c.l.b16 %v250
    %v1085 = vunpack.c.l.b16 %v251
    %v1086 = vunpack.c.h.b16 %v251
    %v1087 = vunpack.c.l.b16 %v252
    %v1088 = vunpack.c.h.b16 %v252
    %v1089 = vunpack.c.l.b16 %v253
    %v1090 = vunpack.c.h.b16 %v253
    %v1091 = vunpack.c.l.b16 %v254
    %v1092 = vunpack.c.h.b16 %v254
    %v1093 = vunpack.c.l.b16 %v255
    %v1094 = vunpack.c.h.b16 %v255
    %v1095 = vunpack.c.l.b16 %v256
    %v1096 = vunpack.c.h.b16 %v256
    %v1097 = vunpack.c.l.b16 %v257
    %v1098 = vunpack.c.h.b16 %v257
    %v1099 = vunpack.c.l.b16 %v258
    %v1100 = vunpack.c.h.b16 %v258
    %v1101 = vunpack.c.l.b16 %v259
    %v1102 = vunpack.c.h.b16 %v259
    %v1103 = vunpack.c.l.b16 %v260
    %v1104 = vunpack.c.h.b16 %v260
    %v1105 = vunpack.c.l.b16 %v261
    %v1106 = vunpack.c.h.b16 %v261
    %v1107 = vunpack.c.l.b16 %v262
    %v1108 = vpack.c.b16 %v671, %v648
    %v1109 = vpack.c.b16 %v672, %v649
    %v1110 = vpack.c.b16 %v673, %v650
    %v1111 = vpack.c.b16 %v674, %v651
    %v1112 = vpack.c.b16 %v675, %v652
    %v1113 = vpack.c.b16 %v676, %v653
    %v1114 = vpack.c.b16 %v677, %v654
    %v1115 = vpack.c.b16 %v678, %v655
    %v1116 = vpack.c.b16 %v679, %v656
    %v1117 = vpack.c.b16 %v680, %v657
    %v1118 = vpack.c.b16 %v681, %v658
    %v1119 = vpack.c.b16 %v682, %v659
    %v1120 = vpack.c.b16 %v683, %v660
    %v1121 = vpack.c.b16 %v684, %v661
    %v1122 = vpack.c.b16 %v685, %v662
    %v1123 = vpack.c.b16 %v686, %v663
    %v1124 = vpack.c.b16 %v687, %v664
    %v1125 = vpack.c.b16 %v688, %v665
    %v1126 = vpack.c.b16 %v689, %v666
    %v1127 = vpack.c.b16 %v690, %v667
    %v1128 = vpack.c.b16 %v691, %v668
    %v1129 = vpack.c.b16 %v692, %v669
    %v1130 = vpack.c.b16 %v693, %v670
    %v1131 = vpack.c.b16 %v717, %v694
    %v1132 = vpack.c.b16 %v718, %v695
    %v1133 = vpack.c.b16 %v719, %v696
    %v1134 = vpack.c.b16 %v720, %v697
    %v1135 = vpack.c.b16 %v721, %v698
    %v1136 = vpack.c.b16 %v722, %v699
    %v1137 = vpack.c.b16 %v723, %v700
    %v1138 = vpack.c.b16 %v724, %v701
    %v1139 = vpack.c.b16 %v725, %v702
    %v1140 = vpack.c.b16 %v726, %v703
    %v1141 = vpack.c.b16 %v727, %v704
    %v1142 = vpack.c.b16 %v728, %v705
    %v1143 = vpack.c.b16 %v729, %v706
    %v1144 = vpack.c.b16 %v730, %v707
    %v1145 = vpack.c.b16 %v731, %v708
    %v1146 = vpack.c.b16 %v732, %v709
    %v1147 = vpack.c.b16 %v733, %v710
    %v1148 = vpack.c.b16 %v734, %v711
    %v1149 = vpack.c.b16 %v735, %v712
    %v1150 = vpack.c.b16 %v736, %v713
    %v1151 = vpack.c.b16 %v737, %v714
    %v1152 = vpack.c.b16 %v738, %v715
    %v1153 = vpack.c.b16 %v739, %v716
    %v1154 = vpack.c.b16 %v763, %v740
    %v1155 = vpack.c.b16 %v764, %v741
    %v1156 = vpack.c.b16 %v765, %v742
    %v1157 = vpack.c.b16 %v766, %v743
    %v1158 = vpack.c.b16 %v767, %v744
    %v1159 = vpack.c.b16 %v768, %v745
    %v1160 = vpack.c.b16 %v769, %v746
    %v1161 = vpack.c.b16 %v770, %v747
    %v1162 = vpack.c.b16 %v771, %v748
    %v1163 = vpack.c.b16 %v772, %v749
    %v1164 = vpack.c.b16 %v773, %v750
    %v1165 = vpack.c.b16 %v774, %v751
    %v1166 = vpack.c.b16 %v775, %v752
    %v1167 = vpack.c.b16 %v776, %v753
    %v1168 = vpack.c.b16 %v777, %v754
    %v1169 = vpack.c.b16 %v778, %v755
    %v1170 = vpack.c.b16 %v779, %v756
    %v1171 = vpack.c.b16 %v780, %v757
    %v1172 = vpack.c.b16 %v781, %v758
    %v1173 = vpack.c.b16 %v782, %v759
    %v1174 = vpack.c.b16 %v783, %v760
    %v1175 = vpack.c.b16 %v784, %v761
    %v1176 = vpack.c.b16 %v785, %v762
    %v1177 = vpack.c.b16 %v809, %v786
    %v1178 = vpack.c.b16 %v810, %v787
    %v1179 = vpack.c.b16 %v811, %v788
    %v1180 = vpack.c.b16 %v812, %v789
    %v1181 = vpack.c.b16 %v813, %v790
    %v1182 = vpack.c.b16 %v814, %v791
    %v1183 = vpack.c.b16 %v815, %v792
    %v1184 = vpack.c.b16 %v816, %v793
    %v1185 = vpack.c.b16 %v817, %v794
    %v1186 = vpack.c.b16 %v818, %v795
    %v1187 = vpack.c.b16 %v819, %v796
    %v1188 = vpack.c.b16 %v820, %v797
    %v1189 = vpack.c.b16 %v821, %v798
    %v1190 = vpack.c.b16 %v822, %v799
    %v1191 = vpack.c.b16 %v823, %v800
    %v1192 = vpack.c.b16 %v824, %v801
    %v1193 = vpack.c.b16 %v825, %v802
    %v1194 = vpack.c.b16 %v826, %v803
    %v1195 = vpack.c.b16 %v827, %v804
    %v1196 = vpack.c.b16 %v828, %v805
    %v1197 = vpack.c.b16 %v829, %v806
    %v1198 = vpack.c.b16 %v830, %v807
    %v1199 = vpack.c.b16 %v831, %v808
    %v1200 = vpack.c.b16 %v855, %v832
    %v1201 = vpack.c.b16 %v856, %v833
    %v1202 = vpack.c.b16 %v857, %v834
    %v1203 = vpack.c.b16 %v858, %v835
    %v1204 = vpack.c.b16 %v859, %v836
    %v1205 = vpack.c.b16 %v860, %v837
    %v1206 = vpack.c.b16 %v861, %v838
    %v1207 = vpack.c.b16 %v862, %v839
    %v1208 = vpack.c.b16 %v863, %v840
    %v1209 = vpack.c.b16 %v864, %v841
    %v1210 = vpack.c.b16 %v865, %v842
    %v1211 = vpack.c.b16 %v866, %v843
    %v1212 = vpack.c.b16 %v867, %v844
    %v1213 = vpack.c.b16 %v868, %v845
    %v1214 = vpack.c.b16 %v869, %v846
    %v1215 = vpack.c.b16 %v870, %v847
    %v1216 = vpack.c.b16 %v871, %v848
    %v1217 = vpack.c.b16 %v872, %v849
    %v1218 = vpack.c.b16 %v873, %v850
    %v1219 = vpack.c.b16 %v874, %v851
    %v1220 = vpack.c.b16 %v875, %v852
    %v1221 = vpack.c.b16 %v876, %v853
    %v1222 = vpack.c.b16 %v877, %v854
    %v1223 = vpack.c.b16 %v901, %v878
    %v1224 = vpack.c.b16 %v902, %v879
    %v1225 = vpack.c.b16 %v903, %v880
    %v1226 = vpack.c.b16 %v904, %v881
    %v1227 = vpack.c.b16 %v905, %v882
    %v1228 = vpack.c.b16 %v906, %v883
    %v1229 = vpack.c.b16 %v907, %v884
    %v1230 = vpack.c.b16 %v908, %v885
    %v1231 = vpack.c.b16 %v909, %v886
    %v1232 = vpack.c.b16 %v910, %v887
    %v1233 = vpack.c.b16 %v911, %v888
    %v1234 = vpack.c.b16 %v912, %v889
    %v1235 = vpack.c.b16 %v913, %v890
    %v1236 = vpack.c.b16 %v914, %v891
    %v1237 = vpack.c.b16 %v915, %v892
    %v1238 = vpack.c.b16 %v916, %v893
    %v1239 = vpack.c.b16 %v917, %v894
    %v1240 = vpack.c.b16 %v918, %v895
    %v1241 = vpack.c.b16 %v919, %v896
    %v1242 = vpack.c.b16 %v920, %v897
    %v1243 = vpack.c.b16 %v921, %v898
    %v1244 = vpack.c.b16 %v922, %v899
    %v1245 = vpack.c.b16 %v923, %v900
    %v1246 = vpack.c.b16 %v947, %v924
    %v1247 = vpack.c.b16 %v948, %v925
    %v1248 = vpack.c.b16 %v949, %v926
    %v1249 = vpack.c.b16 %v950, %v927
    %v1250 = vpack.c.b16 %v951, %v928
    %v1251 = vpack.c.b16 %v952, %v929
    %v1252 = vpack.c.b16 %v953, %v930
    %v1253 = vpack.c.b16 %v954, %v931
    %v1254 = vpack.c.b16 %v955, %v932
    %v1255 = vpack.c.b16 %v956, %v933
    %v1256 = vpack.c.b16 %v957, %v934
    %v1257 = vpack.c.b16 %v958, %v935
    %v1258 = vpack.c.b16 %v959, %v936
    %v1259 = vpack.c.b16 %v960, %v937
    %v1260 = vpack.c.b16 %v961, %v938
    %v1261 = vpack.c.b16 %v962, %v939
    %v1262 = vpack.c.b16 %v963, %v940
    %v1263 = vpack.c.b16 %v964, %v941
    %v1264 = vpack.c.b16 %v965, %v942
    %v1265 = vpack.c.b16 %v966, %v943
    %v1266 = vpack.c.b16 %v967, %v944
    %v1267 = vpack.c.b16 %v968, %v945
    %v1268 = vpack.c.b16 %v969, %v946
    %v1269 = vpack.c.b16 %v993, %v970
    %v1270 = vpack.c.b16 %v994, %v971
    %v1271 = vpack.c.b16 %v995, %v972
    %v1272 = vpack.c.b16 %v996, %v973
    %v1273 = vpack.c.b16 %v997, %v974
    %v1274 = vpack.c.b16 %v998, %v975
    %v1275 = vpack.c.b16 %v999, %v976
    %v1276 = vpack.c.b16 %v1000, %v977
    %v1277 = vpack.c.b16 %v1001, %v978
    %v1278 = vpack.c.b16 %v1002, %v979
    %v1279 = vpack.c.b16 %v1003, %v980
    %v1280 = vpack.c.b16 %v1004, %v981
    %v1281 = vpack.c.b16 %v1005, %v982
    %v1282 = vpack.c.b16 %v1006, %v983
    %v1283 = vpack.c.b16 %v1007, %v984
    %v1284 = vpack.c.b16 %v1008, %v985
    %v1285 = vpack.c.b16 %v1009, %v986
    %v1286 = vpack.c.b16 %v1010, %v987
    %v1287 = vpack.c.b16 %v1011, %v988
    %v1288 = vpack.c.b16 %v1012, %v989
    %v1289 = vpack.c.b16 %v1013, %v990
    %v1290 = vpack.c.b16 %v1014, %v991
    %v1291 = vpack.c.b16 %v1015, %v992
    %v1292 = vpack.c.b16 %v1039, %v1016
    %v1293 = vpack.c.b16 %v1040, %v1017
    %v1294 = vpack.c.b16 %v1041, %v1018
    %v1295 = vpack.c.b16 %v1042, %v1019
    %v1296 = vpack.c.b16 %v1043, %v1020
    %v1297 = vpack.c.b16 %v1044, %v1021
    %v1298 = vpack.c.b16 %v1045, %v1022
    %v1299 = vpack.c.b16 %v1046, %v1023
    %v1300 = vpack.c.b16 %v1047, %v1024
    %v1301 = vpack.c.b16 %v1048, %v1025
    %v1302 = vpack.c.b16 %v1049, %v1026
    %v1303 = vpack.c.b16 %v1050, %v1027
    %v1304 = vpack.c.b16 %v1051, %v1028
    %v1305 = vpack.c.b16 %v1052, %v1029
    %v1306 = vpack.c.b16 %v1053, %v1030
    %v1307 = vpack.c.b16 %v1054, %v1031
    %v1308 = vpack.c.b16 %v1055, %v1032
    %v1309 = vpack.c.b16 %v1056, %v1033
    %v1310 = vpack.c.b16 %v1057, %v1034
    %v1311 = vpack.c.b16 %v1058, %v1035
    %v1312 = vpack.c.b16 %v1059, %v1036
    %v1313 = vpack.c.b16 %v1060, %v1037
    %v1314 = vpack.c.b16 %v1061, %v1038
    %v1315 = vpack.c.b16 %v1085, %v1062
    %v1316 = vpack.c.b16 %v1086, %v1063
    %v1317 = vpack.c.b16 %v1087, %v1064
    %v1318 = vpack.c.b16 %v1088, %v1065
    %v1319 = vpack.c.b16 %v1089, %v1066
    %v1320 = vpack.c.b16 %v1090, %v1067
    %v1321 = vpack.c.b16 %v1091, %v1068
    %v1322 = vpack.c.b16 %v1092, %v1069
    %v1323 = vpack.c.b16 %v1093, %v1070
    %v1324 = vpack.c.b16 %v1094, %v1071
    %v1325 = vpack.c.b16 %v1095, %v1072
    %v1326 = vpack.c.b16 %v1096, %v1073
    %v1327 = vpack.c.b16 %v1097, %v1074
    %v1328 = vpack.c.b16 %v1098, %v1075
    %v1329 = vpack.c.b16 %v1099, %v1076
    %v1330 = vpack.c.b16 %v1100, %v1077
    %v1331 = vpack.c.b16 %v1101, %v1078
    %v1332 = vpack.c.b16 %v1102, %v1079
    %v1333 = vpack.c.b16 %v1103, %v1080
    %v1334 = vpack.c.b16 %v1104, %v1081
    %v1335 = vpack.c.b16 %v1105, %v1082
    %v1336 = vpack.c.b16 %v1106, %v1083
    %v1337 = vpack.c.b16 %v1107, %v1084
    %vm1568 = vcmask 261120
    %v1570 = vsel %vm1568, %v406, 0
    %1572 = vmatprep.subr.bf16.mxu0 %v1109
    %1573 = vmatpush1.bf16.msra.mxu0 %v1108
    %1574 = vmatprep.subr.bf16.mxu0 %v1132
    %1575 = vmatpush1.bf16.msra.mxu0 %v1131
    %1576 = vmatprep.subr.bf16.mxu0 %v1155
    %1577 = vmatpush1.bf16.msra.mxu0 %v1154
    %1578 = vmatprep.subr.bf16.mxu0 %v1178
    %1579 = vmatpush1.bf16.msra.mxu0 %v1177
    %1580 = vmatprep.subr.bf16.mxu0 %v1201
    %1581 = vmatpush1.bf16.msra.mxu0 %v1200
    %1582 = vmatprep.subr.bf16.mxu0 %v1224
    %1583 = vmatpush1.bf16.msra.mxu0 %v1223
    %1584 = vmatprep.subr.bf16.mxu0 %v1247
    %1585 = vmatpush1.bf16.msra.mxu0 %v1246
    %1586 = vmatprep.subr.bf16.mxu0 %v1270
    %1587 = vmatpush1.bf16.msra.mxu0 %v1269
    %1588 = vmatprep.subr.bf16.mxu0 %v1293
    %1589 = vmatpush1.bf16.msra.mxu0 %v1292
    %1590 = vmatprep.subr.bf16.mxu0 %v1316
    %1591 = vmatpush1.bf16.msra.mxu0 %v1315
    %1592 = vmatprep.subr.bf16.mxu0 0
    %1593 = vmatpush1.bf16.msra.mxu0 0
    %1594 = vmatprep.subr.bf16.mxu0 0
    %1595 = vmatpush1.bf16.msra.mxu0 0
    %1596 = vmatprep.subr.bf16.mxu0 0
    %1597 = vmatpush1.bf16.msra.mxu0 0
    %1598 = vmatprep.subr.bf16.mxu0 0
    %1599 = vmatpush1.bf16.msra.mxu0 0
    %1600 = vmatprep.subr.bf16.mxu0 0
    %1601 = vmatpush1.bf16.msra.mxu0 0
    %1602 = vmatprep.subr.bf16.mxu0 0
    %1603 = vmatpush1.bf16.msra.mxu0 0
    %1604 = vmatprep.mubr.bf16.mxu0 %v1570
    %1605 = vmatmul.mubr.bf16.gmra.mrb[0].mxu0 %v399
    %v1606 = vpop.f32.mrb[0].mxu0
    %v1607 = vadd.f32 %v272, %v1606
    %v1608 = vpop.f32.mrb[0].mxu0
    %v1609 = vadd.f32 %v276, %v1608
    %v1610 = vpop.f32.mrb[0].mxu0
    %v1611 = vpop.f32.mrb[0].mxu0
    %1612 = vdwg.mxu0
    %1613 = vmatprep.subr.bf16.mxu0 %v1111
    %1614 = vmatpush1.bf16.msra.mxu0 %v1110
    %1615 = vmatprep.subr.bf16.mxu0 %v1134
    %1616 = vmatpush1.bf16.msra.mxu0 %v1133
    %1617 = vmatprep.subr.bf16.mxu0 %v1157
    %1618 = vmatpush1.bf16.msra.mxu0 %v1156
    %1619 = vmatprep.subr.bf16.mxu0 %v1180
    %1620 = vmatpush1.bf16.msra.mxu0 %v1179
    %1621 = vmatprep.subr.bf16.mxu0 %v1203
    %1622 = vmatpush1.bf16.msra.mxu0 %v1202
    %1623 = vmatprep.subr.bf16.mxu0 %v1226
    %1624 = vmatpush1.bf16.msra.mxu0 %v1225
    %1625 = vmatprep.subr.bf16.mxu0 %v1249
    %1626 = vmatpush1.bf16.msra.mxu0 %v1248
    %1627 = vmatprep.subr.bf16.mxu0 %v1272
    %1628 = vmatpush1.bf16.msra.mxu0 %v1271
    %1629 = vmatprep.subr.bf16.mxu0 %v1295
    %1630 = vmatpush1.bf16.msra.mxu0 %v1294
    %1631 = vmatprep.subr.bf16.mxu0 %v1318
    %1632 = vmatpush1.bf16.msra.mxu0 %v1317
    %1633 = vmatprep.subr.bf16.mxu0 0
    %1634 = vmatpush1.bf16.msra.mxu0 0
    %1635 = vmatprep.subr.bf16.mxu0 0
    %1636 = vmatpush1.bf16.msra.mxu0 0
    %1637 = vmatprep.subr.bf16.mxu0 0
    %1638 = vmatpush1.bf16.msra.mxu0 0
    %1639 = vmatprep.subr.bf16.mxu0 0
    %1640 = vmatpush1.bf16.msra.mxu0 0
    %1641 = vmatprep.subr.bf16.mxu0 0
    %1642 = vmatpush1.bf16.msra.mxu0 0
    %1643 = vmatprep.subr.bf16.mxu0 0
    %1644 = vmatpush1.bf16.msra.mxu0 0
    %1645 = vmatprep.mubr.bf16.mxu0 %v1570
    %1646 = vmatmul.mubr.bf16.gmra.mrb[0].mxu0 %v399
    %v1647 = vpop.f32.mrb[0].mxu0
    %v1648 = vadd.f32 %v280, %v1647
    %v1649 = vpop.f32.mrb[0].mxu0
    %v1650 = vadd.f32 %v284, %v1649
    %v1651 = vpop.f32.mrb[0].mxu0
    %v1652 = vpop.f32.mrb[0].mxu0
    %1653 = vdwg.mxu0
    %1654 = vmatprep.subr.bf16.mxu0 %v1113
    %1655 = vmatpush1.bf16.msra.mxu0 %v1112
    %1656 = vmatprep.subr.bf16.mxu0 %v1136
    %1657 = vmatpush1.bf16.msra.mxu0 %v1135
    %1658 = vmatprep.subr.bf16.mxu0 %v1159
    %1659 = vmatpush1.bf16.msra.mxu0 %v1158
    %1660 = vmatprep.subr.bf16.mxu0 %v1182
    %1661 = vmatpush1.bf16.msra.mxu0 %v1181
    %1662 = vmatprep.subr.bf16.mxu0 %v1205
    %1663 = vmatpush1.bf16.msra.mxu0 %v1204
    %1664 = vmatprep.subr.bf16.mxu0 %v1228
    %1665 = vmatpush1.bf16.msra.mxu0 %v1227
    %1666 = vmatprep.subr.bf16.mxu0 %v1251
    %1667 = vmatpush1.bf16.msra.mxu0 %v1250
    %1668 = vmatprep.subr.bf16.mxu0 %v1274
    %1669 = vmatpush1.bf16.msra.mxu0 %v1273
    %1670 = vmatprep.subr.bf16.mxu0 %v1297
    %1671 = vmatpush1.bf16.msra.mxu0 %v1296
    %1672 = vmatprep.subr.bf16.mxu0 %v1320
    %1673 = vmatpush1.bf16.msra.mxu0 %v1319
    %1674 = vmatprep.subr.bf16.mxu0 0
    %1675 = vmatpush1.bf16.msra.mxu0 0
    %1676 = vmatprep.subr.bf16.mxu0 0
    %1677 = vmatpush1.bf16.msra.mxu0 0
    %1678 = vmatprep.subr.bf16.mxu0 0
    %1679 = vmatpush1.bf16.msra.mxu0 0
    %1680 = vmatprep.subr.bf16.mxu0 0
    %1681 = vmatpush1.bf16.msra.mxu0 0
    %1682 = vmatprep.subr.bf16.mxu0 0
    %1683 = vmatpush1.bf16.msra.mxu0 0
    %1684 = vmatprep.subr.bf16.mxu0 0
    %1685 = vmatpush1.bf16.msra.mxu0 0
    %1686 = vmatprep.mubr.bf16.mxu0 %v1570
    %1687 = vmatmul.mubr.bf16.gmra.mrb[0].mxu0 %v399
    %v1688 = vpop.f32.mrb[0].mxu0
    %v1689 = vadd.f32 %v288, %v1688
    %v1690 = vpop.f32.mrb[0].mxu0
    %v1691 = vadd.f32 %v292, %v1690
    %v1692 = vpop.f32.mrb[0].mxu0
    %v1693 = vpop.f32.mrb[0].mxu0
    %1694 = vdwg.mxu0
    %1695 = vmatprep.subr.bf16.mxu0 %v1115
    %1696 = vmatpush1.bf16.msra.mxu0 %v1114
    %1697 = vmatprep.subr.bf16.mxu0 %v1138
    %1698 = vmatpush1.bf16.msra.mxu0 %v1137
    %1699 = vmatprep.subr.bf16.mxu0 %v1161
    %1700 = vmatpush1.bf16.msra.mxu0 %v1160
    %1701 = vmatprep.subr.bf16.mxu0 %v1184
    %1702 = vmatpush1.bf16.msra.mxu0 %v1183
    %1703 = vmatprep.subr.bf16.mxu0 %v1207
    %1704 = vmatpush1.bf16.msra.mxu0 %v1206
    %1705 = vmatprep.subr.bf16.mxu0 %v1230
    %1706 = vmatpush1.bf16.msra.mxu0 %v1229
    %1707 = vmatprep.subr.bf16.mxu0 %v1253
    %1708 = vmatpush1.bf16.msra.mxu0 %v1252
    %1709 = vmatprep.subr.bf16.mxu0 %v1276
    %1710 = vmatpush1.bf16.msra.mxu0 %v1275
    %1711 = vmatprep.subr.bf16.mxu0 %v1299
    %1712 = vmatpush1.bf16.msra.mxu0 %v1298
    %1713 = vmatprep.subr.bf16.mxu0 %v1322
    %1714 = vmatpush1.bf16.msra.mxu0 %v1321
    %1715 = vmatprep.subr.bf16.mxu0 0
    %1716 = vmatpush1.bf16.msra.mxu0 0
    %1717 = vmatprep.subr.bf16.mxu0 0
    %1718 = vmatpush1.bf16.msra.mxu0 0
    %1719 = vmatprep.subr.bf16.mxu0 0
    %1720 = vmatpush1.bf16.msra.mxu0 0
    %1721 = vmatprep.subr.bf16.mxu0 0
    %1722 = vmatpush1.bf16.msra.mxu0 0
    %1723 = vmatprep.subr.bf16.mxu0 0
    %1724 = vmatpush1.bf16.msra.mxu0 0
    %1725 = vmatprep.subr.bf16.mxu0 0
    %1726 = vmatpush1.bf16.msra.mxu0 0
    %1727 = vmatprep.mubr.bf16.mxu0 %v1570
    %1728 = vmatmul.mubr.bf16.gmra.mrb[0].mxu0 %v399
    %v1729 = vpop.f32.mrb[0].mxu0
    %v1730 = vadd.f32 %v296, %v1729
    %v1731 = vpop.f32.mrb[0].mxu0
    %v1732 = vadd.f32 %v300, %v1731
    %v1733 = vpop.f32.mrb[0].mxu0
    %v1734 = vpop.f32.mrb[0].mxu0
    %1735 = vdwg.mxu0
    %1736 = vmatprep.subr.bf16.mxu0 %v1117
    %1737 = vmatpush1.bf16.msra.mxu0 %v1116
    %1738 = vmatprep.subr.bf16.mxu0 %v1140
    %1739 = vmatpush1.bf16.msra.mxu0 %v1139
    %1740 = vmatprep.subr.bf16.mxu0 %v1163
    %1741 = vmatpush1.bf16.msra.mxu0 %v1162
    %1742 = vmatprep.subr.bf16.mxu0 %v1186
    %1743 = vmatpush1.bf16.msra.mxu0 %v1185
    %1744 = vmatprep.subr.bf16.mxu0 %v1209
    %1745 = vmatpush1.bf16.msra.mxu0 %v1208
    %1746 = vmatprep.subr.bf16.mxu0 %v1232
    %1747 = vmatpush1.bf16.msra.mxu0 %v1231
    %1748 = vmatprep.subr.bf16.mxu0 %v1255
    %1749 = vmatpush1.bf16.msra.mxu0 %v1254
    %1750 = vmatprep.subr.bf16.mxu0 %v1278
    %1751 = vmatpush1.bf16.msra.mxu0 %v1277
    %1752 = vmatprep.subr.bf16.mxu0 %v1301
    %1753 = vmatpush1.bf16.msra.mxu0 %v1300
    %1754 = vmatprep.subr.bf16.mxu0 %v1324
    %1755 = vmatpush1.bf16.msra.mxu0 %v1323
    %1756 = vmatprep.subr.bf16.mxu0 0
    %1757 = vmatpush1.bf16.msra.mxu0 0
    %1758 = vmatprep.subr.bf16.mxu0 0
    %1759 = vmatpush1.bf16.msra.mxu0 0
    %1760 = vmatprep.subr.bf16.mxu0 0
    %1761 = vmatpush1.bf16.msra.mxu0 0
    %1762 = vmatprep.subr.bf16.mxu0 0
    %1763 = vmatpush1.bf16.msra.mxu0 0
    %1764 = vmatprep.subr.bf16.mxu0 0
    %1765 = vmatpush1.bf16.msra.mxu0 0
    %1766 = vmatprep.subr.bf16.mxu0 0
    %1767 = vmatpush1.bf16.msra.mxu0 0
    %1768 = vmatprep.mubr.bf16.mxu0 %v1570
    %1769 = vmatmul.mubr.bf16.gmra.mrb[0].mxu0 %v399
    %v1770 = vpop.f32.mrb[0].mxu0
    %v1771 = vadd.f32 %v304, %v1770
    %v1772 = vpop.f32.mrb[0].mxu0
    %v1773 = vadd.f32 %v308, %v1772
    %v1774 = vpop.f32.mrb[0].mxu0
    %v1775 = vpop.f32.mrb[0].mxu0
    %1776 = vdwg.mxu0
    %1777 = vmatprep.subr.bf16.mxu0 %v1119
    %1778 = vmatpush1.bf16.msra.mxu0 %v1118
    %1779 = vmatprep.subr.bf16.mxu0 %v1142
    %1780 = vmatpush1.bf16.msra.mxu0 %v1141
    %1781 = vmatprep.subr.bf16.mxu0 %v1165
    %1782 = vmatpush1.bf16.msra.mxu0 %v1164
    %1783 = vmatprep.subr.bf16.mxu0 %v1188
    %1784 = vmatpush1.bf16.msra.mxu0 %v1187
    %1785 = vmatprep.subr.bf16.mxu0 %v1211
    %1786 = vmatpush1.bf16.msra.mxu0 %v1210
    %1787 = vmatprep.subr.bf16.mxu0 %v1234
    %1788 = vmatpush1.bf16.msra.mxu0 %v1233
    %1789 = vmatprep.subr.bf16.mxu0 %v1257
    %1790 = vmatpush1.bf16.msra.mxu0 %v1256
    %1791 = vmatprep.subr.bf16.mxu0 %v1280
    %1792 = vmatpush1.bf16.msra.mxu0 %v1279
    %1793 = vmatprep.subr.bf16.mxu0 %v1303
    %1794 = vmatpush1.bf16.msra.mxu0 %v1302
    %1795 = vmatprep.subr.bf16.mxu0 %v1326
    %1796 = vmatpush1.bf16.msra.mxu0 %v1325
    %1797 = vmatprep.subr.bf16.mxu0 0
    %1798 = vmatpush1.bf16.msra.mxu0 0
    %1799 = vmatprep.subr.bf16.mxu0 0
    %1800 = vmatpush1.bf16.msra.mxu0 0
    %1801 = vmatprep.subr.bf16.mxu0 0
    %1802 = vmatpush1.bf16.msra.mxu0 0
    %1803 = vmatprep.subr.bf16.mxu0 0
    %1804 = vmatpush1.bf16.msra.mxu0 0
    %1805 = vmatprep.subr.bf16.mxu0 0
    %1806 = vmatpush1.bf16.msra.mxu0 0
    %1807 = vmatprep.subr.bf16.mxu0 0
    %1808 = vmatpush1.bf16.msra.mxu0 0
    %1809 = vmatprep.mubr.bf16.mxu0 %v1570
    %1810 = vmatmul.mubr.bf16.gmra.mrb[0].mxu0 %v399
    %v1811 = vpop.f32.mrb[0].mxu0
    %v1812 = vadd.f32 %v312, %v1811
    %v1813 = vpop.f32.mrb[0].mxu0
    %v1814 = vadd.f32 %v316, %v1813
    %v1815 = vpop.f32.mrb[0].mxu0
    %v1816 = vpop.f32.mrb[0].mxu0
    %1817 = vdwg.mxu0
    %1818 = vmatprep.subr.bf16.mxu0 %v1121
    %1819 = vmatpush1.bf16.msra.mxu0 %v1120
    %1820 = vmatprep.subr.bf16.mxu0 %v1144
    %1821 = vmatpush1.bf16.msra.mxu0 %v1143
    %1822 = vmatprep.subr.bf16.mxu0 %v1167
    %1823 = vmatpush1.bf16.msra.mxu0 %v1166
    %1824 = vmatprep.subr.bf16.mxu0 %v1190
    %1825 = vmatpush1.bf16.msra.mxu0 %v1189
    %1826 = vmatprep.subr.bf16.mxu0 %v1213
    %1827 = vmatpush1.bf16.msra.mxu0 %v1212
    %1828 = vmatprep.subr.bf16.mxu0 %v1236
    %1829 = vmatpush1.bf16.msra.mxu0 %v1235
    %1830 = vmatprep.subr.bf16.mxu0 %v1259
    %1831 = vmatpush1.bf16.msra.mxu0 %v1258
    %1832 = vmatprep.subr.bf16.mxu0 %v1282
    %1833 = vmatpush1.bf16.msra.mxu0 %v1281
    %1834 = vmatprep.subr.bf16.mxu0 %v1305
    %1835 = vmatpush1.bf16.msra.mxu0 %v1304
    %1836 = vmatprep.subr.bf16.mxu0 %v1328
    %1837 = vmatpush1.bf16.msra.mxu0 %v1327
    %1838 = vmatprep.subr.bf16.mxu0 0
    %1839 = vmatpush1.bf16.msra.mxu0 0
    %1840 = vmatprep.subr.bf16.mxu0 0
    %1841 = vmatpush1.bf16.msra.mxu0 0
    %1842 = vmatprep.subr.bf16.mxu0 0
    %1843 = vmatpush1.bf16.msra.mxu0 0
    %1844 = vmatprep.subr.bf16.mxu0 0
    %1845 = vmatpush1.bf16.msra.mxu0 0
    %1846 = vmatprep.subr.bf16.mxu0 0
    %1847 = vmatpush1.bf16.msra.mxu0 0
    %1848 = vmatprep.subr.bf16.mxu0 0
    %1849 = vmatpush1.bf16.msra.mxu0 0
    %1850 = vmatprep.mubr.bf16.mxu0 %v1570
    %1851 = vmatmul.mubr.bf16.gmra.mrb[0].mxu0 %v399
    %v1852 = vpop.f32.mrb[0].mxu0
    %v1853 = vadd.f32 %v320, %v1852
    %v1854 = vpop.f32.mrb[0].mxu0
    %v1855 = vadd.f32 %v324, %v1854
    %v1856 = vpop.f32.mrb[0].mxu0
    %v1857 = vpop.f32.mrb[0].mxu0
    %1858 = vdwg.mxu0
    %1859 = vmatprep.subr.bf16.mxu0 %v1123
    %1860 = vmatpush1.bf16.msra.mxu0 %v1122
    %1861 = vmatprep.subr.bf16.mxu0 %v1146
    %1862 = vmatpush1.bf16.msra.mxu0 %v1145
    %1863 = vmatprep.subr.bf16.mxu0 %v1169
    %1864 = vmatpush1.bf16.msra.mxu0 %v1168
    %1865 = vmatprep.subr.bf16.mxu0 %v1192
    %1866 = vmatpush1.bf16.msra.mxu0 %v1191
    %1867 = vmatprep.subr.bf16.mxu0 %v1215
    %1868 = vmatpush1.bf16.msra.mxu0 %v1214
    %1869 = vmatprep.subr.bf16.mxu0 %v1238
    %1870 = vmatpush1.bf16.msra.mxu0 %v1237
    %1871 = vmatprep.subr.bf16.mxu0 %v1261
    %1872 = vmatpush1.bf16.msra.mxu0 %v1260
    %1873 = vmatprep.subr.bf16.mxu0 %v1284
    %1874 = vmatpush1.bf16.msra.mxu0 %v1283
    %1875 = vmatprep.subr.bf16.mxu0 %v1307
    %1876 = vmatpush1.bf16.msra.mxu0 %v1306
    %1877 = vmatprep.subr.bf16.mxu0 %v1330
    %1878 = vmatpush1.bf16.msra.mxu0 %v1329
    %1879 = vmatprep.subr.bf16.mxu0 0
    %1880 = vmatpush1.bf16.msra.mxu0 0
    %1881 = vmatprep.subr.bf16.mxu0 0
    %1882 = vmatpush1.bf16.msra.mxu0 0
    %1883 = vmatprep.subr.bf16.mxu0 0
    %1884 = vmatpush1.bf16.msra.mxu0 0
    %1885 = vmatprep.subr.bf16.mxu0 0
    %1886 = vmatpush1.bf16.msra.mxu0 0
    %1887 = vmatprep.subr.bf16.mxu0 0
    %1888 = vmatpush1.bf16.msra.mxu0 0
    %1889 = vmatprep.subr.bf16.mxu0 0
    %1890 = vmatpush1.bf16.msra.mxu0 0
    %1891 = vmatprep.mubr.bf16.mxu0 %v1570
    %1892 = vmatmul.mubr.bf16.gmra.mrb[0].mxu0 %v399
    %v1893 = vpop.f32.mrb[0].mxu0
    %v1894 = vadd.f32 %v328, %v1893
    %v1895 = vpop.f32.mrb[0].mxu0
    %v1896 = vadd.f32 %v332, %v1895
    %v1897 = vpop.f32.mrb[0].mxu0
    %v1898 = vpop.f32.mrb[0].mxu0
    %1899 = vdwg.mxu0
    %1900 = vmatprep.subr.bf16.mxu0 %v1125
    %1901 = vmatpush1.bf16.msra.mxu0 %v1124
    %1902 = vmatprep.subr.bf16.mxu0 %v1148
    %1903 = vmatpush1.bf16.msra.mxu0 %v1147
    %1904 = vmatprep.subr.bf16.mxu0 %v1171
    %1905 = vmatpush1.bf16.msra.mxu0 %v1170
    %1906 = vmatprep.subr.bf16.mxu0 %v1194
    %1907 = vmatpush1.bf16.msra.mxu0 %v1193
    %1908 = vmatprep.subr.bf16.mxu0 %v1217
    %1909 = vmatpush1.bf16.msra.mxu0 %v1216
    %1910 = vmatprep.subr.bf16.mxu0 %v1240
    %1911 = vmatpush1.bf16.msra.mxu0 %v1239
    %1912 = vmatprep.subr.bf16.mxu0 %v1263
    %1913 = vmatpush1.bf16.msra.mxu0 %v1262
    %1914 = vmatprep.subr.bf16.mxu0 %v1286
    %1915 = vmatpush1.bf16.msra.mxu0 %v1285
    %1916 = vmatprep.subr.bf16.mxu0 %v1309
    %1917 = vmatpush1.bf16.msra.mxu0 %v1308
    %1918 = vmatprep.subr.bf16.mxu0 %v1332
    %1919 = vmatpush1.bf16.msra.mxu0 %v1331
    %1920 = vmatprep.subr.bf16.mxu0 0
    %1921 = vmatpush1.bf16.msra.mxu0 0
    %1922 = vmatprep.subr.bf16.mxu0 0
    %1923 = vmatpush1.bf16.msra.mxu0 0
    %1924 = vmatprep.subr.bf16.mxu0 0
    %1925 = vmatpush1.bf16.msra.mxu0 0
    %1926 = vmatprep.subr.bf16.mxu0 0
    %1927 = vmatpush1.bf16.msra.mxu0 0
    %1928 = vmatprep.subr.bf16.mxu0 0
    %1929 = vmatpush1.bf16.msra.mxu0 0
    %1930 = vmatprep.subr.bf16.mxu0 0
    %1931 = vmatpush1.bf16.msra.mxu0 0
    %1932 = vmatprep.mubr.bf16.mxu0 %v1570
    %1933 = vmatmul.mubr.bf16.gmra.mrb[0].mxu0 %v399
    %v1934 = vpop.f32.mrb[0].mxu0
    %v1935 = vadd.f32 %v336, %v1934
    %v1936 = vpop.f32.mrb[0].mxu0
    %v1937 = vadd.f32 %v340, %v1936
    %v1938 = vpop.f32.mrb[0].mxu0
    %v1939 = vpop.f32.mrb[0].mxu0
    %1940 = vdwg.mxu0
    %1941 = vmatprep.subr.bf16.mxu0 %v1127
    %1942 = vmatpush1.bf16.msra.mxu0 %v1126
    %1943 = vmatprep.subr.bf16.mxu0 %v1150
    %1944 = vmatpush1.bf16.msra.mxu0 %v1149
    %1945 = vmatprep.subr.bf16.mxu0 %v1173
    %1946 = vmatpush1.bf16.msra.mxu0 %v1172
    %1947 = vmatprep.subr.bf16.mxu0 %v1196
    %1948 = vmatpush1.bf16.msra.mxu0 %v1195
    %1949 = vmatprep.subr.bf16.mxu0 %v1219
    %1950 = vmatpush1.bf16.msra.mxu0 %v1218
    %1951 = vmatprep.subr.bf16.mxu0 %v1242
    %1952 = vmatpush1.bf16.msra.mxu0 %v1241
    %1953 = vmatprep.subr.bf16.mxu0 %v1265
    %1954 = vmatpush1.bf16.msra.mxu0 %v1264
    %1955 = vmatprep.subr.bf16.mxu0 %v1288
    %1956 = vmatpush1.bf16.msra.mxu0 %v1287
    %1957 = vmatprep.subr.bf16.mxu0 %v1311
    %1958 = vmatpush1.bf16.msra.mxu0 %v1310
    %1959 = vmatprep.subr.bf16.mxu0 %v1334
    %1960 = vmatpush1.bf16.msra.mxu0 %v1333
    %1961 = vmatprep.subr.bf16.mxu0 0
    %1962 = vmatpush1.bf16.msra.mxu0 0
    %1963 = vmatprep.subr.bf16.mxu0 0
    %1964 = vmatpush1.bf16.msra.mxu0 0
    %1965 = vmatprep.subr.bf16.mxu0 0
    %1966 = vmatpush1.bf16.msra.mxu0 0
    %1967 = vmatprep.subr.bf16.mxu0 0
    %1968 = vmatpush1.bf16.msra.mxu0 0
    %1969 = vmatprep.subr.bf16.mxu0 0
    %1970 = vmatpush1.bf16.msra.mxu0 0
    %1971 = vmatprep.subr.bf16.mxu0 0
    %1972 = vmatpush1.bf16.msra.mxu0 0
    %1973 = vmatprep.mubr.bf16.mxu0 %v1570
    %1974 = vmatmul.mubr.bf16.gmra.mrb[0].mxu0 %v399
    %v1975 = vpop.f32.mrb[0].mxu0
    %v1976 = vadd.f32 %v344, %v1975
    %v1977 = vpop.f32.mrb[0].mxu0
    %v1978 = vadd.f32 %v348, %v1977
    %v1979 = vpop.f32.mrb[0].mxu0
    %v1980 = vpop.f32.mrb[0].mxu0
    %1981 = vdwg.mxu0
    %1982 = vmatprep.subr.bf16.mxu0 %v1129
    %1983 = vmatpush1.bf16.msra.mxu0 %v1128
    %1984 = vmatprep.subr.bf16.mxu0 %v1152
    %1985 = vmatpush1.bf16.msra.mxu0 %v1151
    %1986 = vmatprep.subr.bf16.mxu0 %v1175
    %1987 = vmatpush1.bf16.msra.mxu0 %v1174
    %1988 = vmatprep.subr.bf16.mxu0 %v1198
    %1989 = vmatpush1.bf16.msra.mxu0 %v1197
    %1990 = vmatprep.subr.bf16.mxu0 %v1221
    %1991 = vmatpush1.bf16.msra.mxu0 %v1220
    %1992 = vmatprep.subr.bf16.mxu0 %v1244
    %1993 = vmatpush1.bf16.msra.mxu0 %v1243
    %1994 = vmatprep.subr.bf16.mxu0 %v1267
    %1995 = vmatpush1.bf16.msra.mxu0 %v1266
    %1996 = vmatprep.subr.bf16.mxu0 %v1290
    %1997 = vmatpush1.bf16.msra.mxu0 %v1289
    %1998 = vmatprep.subr.bf16.mxu0 %v1313
    %1999 = vmatpush1.bf16.msra.mxu0 %v1312
    %2000 = vmatprep.subr.bf16.mxu0 %v1336
    %2001 = vmatpush1.bf16.msra.mxu0 %v1335
    %2002 = vmatprep.subr.bf16.mxu0 0
    %2003 = vmatpush1.bf16.msra.mxu0 0
    %2004 = vmatprep.subr.bf16.mxu0 0
    %2005 = vmatpush1.bf16.msra.mxu0 0
    %2006 = vmatprep.subr.bf16.mxu0 0
    %2007 = vmatpush1.bf16.msra.mxu0 0
    %2008 = vmatprep.subr.bf16.mxu0 0
    %2009 = vmatpush1.bf16.msra.mxu0 0
    %2010 = vmatprep.subr.bf16.mxu0 0
    %2011 = vmatpush1.bf16.msra.mxu0 0
    %2012 = vmatprep.subr.bf16.mxu0 0
    %2013 = vmatpush1.bf16.msra.mxu0 0
    %2014 = vmatprep.mubr.bf16.mxu0 %v1570
    %2015 = vmatmul.mubr.bf16.gmra.mrb[0].mxu0 %v399
    %v2016 = vpop.f32.mrb[0].mxu0
    %v2017 = vadd.f32 %v352, %v2016
    %v2018 = vpop.f32.mrb[0].mxu0
    %v2019 = vadd.f32 %v356, %v2018
    %v2020 = vpop.f32.mrb[0].mxu0
    %v2021 = vpop.f32.mrb[0].mxu0
    %2022 = vdwg.mxu0
    %2023 = vmatprep.subr.bf16.mxu0 0
    %2024 = vmatpush1.bf16.msra.mxu0 %v1130
    %2025 = vmatprep.subr.bf16.mxu0 0
    %2026 = vmatpush1.bf16.msra.mxu0 %v1153
    %2027 = vmatprep.subr.bf16.mxu0 0
    %2028 = vmatpush1.bf16.msra.mxu0 %v1176
    %2029 = vmatprep.subr.bf16.mxu0 0
    %2030 = vmatpush1.bf16.msra.mxu0 %v1199
    %2031 = vmatprep.subr.bf16.mxu0 0
    %2032 = vmatpush1.bf16.msra.mxu0 %v1222
    %2033 = vmatprep.subr.bf16.mxu0 0
    %2034 = vmatpush1.bf16.msra.mxu0 %v1245
    %2035 = vmatprep.subr.bf16.mxu0 0
    %2036 = vmatpush1.bf16.msra.mxu0 %v1268
    %2037 = vmatprep.subr.bf16.mxu0 0
    %2038 = vmatpush1.bf16.msra.mxu0 %v1291
    %2039 = vmatprep.subr.bf16.mxu0 0
    %2040 = vmatpush1.bf16.msra.mxu0 %v1314
    %2041 = vmatprep.subr.bf16.mxu0 0
    %2042 = vmatpush1.bf16.msra.mxu0 %v1337
    %2043 = vmatprep.subr.bf16.mxu0 0
    %2044 = vmatpush1.bf16.msra.mxu0 0
    %2045 = vmatprep.subr.bf16.mxu0 0
    %2046 = vmatpush1.bf16.msra.mxu0 0
    %2047 = vmatprep.subr.bf16.mxu0 0
    %2048 = vmatpush1.bf16.msra.mxu0 0
    %2049 = vmatprep.subr.bf16.mxu0 0
    %2050 = vmatpush1.bf16.msra.mxu0 0
    %2051 = vmatprep.subr.bf16.mxu0 0
    %2052 = vmatpush1.bf16.msra.mxu0 0
    %2053 = vmatprep.subr.bf16.mxu0 0
    %2054 = vmatpush1.bf16.msra.mxu0 0
    %2055 = vmatprep.mubr.bf16.mxu0 %v1570
    %2056 = vmatmul.mubr.bf16.gmra.mrb[0].mxu0 %v399
    %v2057 = vpop.f32.mrb[0].mxu0
    %v2058 = vadd.f32 %v360, %v2057
    %v2059 = vpop.f32.mrb[0].mxu0
    %v2060 = vpop.f32.mrb[0].mxu0
    %v2061 = vpop.f32.mrb[0].mxu0
    %2062 = vdwg.mxu0
    %v2063 = vmax.f32 %v1607, 0.0
    %v2064 = vmax.f32 %v1609, 0.0
    %v2065 = vmax.f32 %v1648, 0.0
    %v2066 = vmax.f32 %v1650, 0.0
    %v2067 = vmax.f32 %v1689, 0.0
    %v2068 = vmax.f32 %v1691, 0.0
    %v2069 = vmax.f32 %v1730, 0.0
    %v2070 = vmax.f32 %v1732, 0.0
    %v2071 = vmax.f32 %v1771, 0.0
    %v2072 = vmax.f32 %v1773, 0.0
    %v2073 = vmax.f32 %v1812, 0.0
    %v2074 = vmax.f32 %v1814, 0.0
    %v2075 = vmax.f32 %v1853, 0.0
    %v2076 = vmax.f32 %v1855, 0.0
    %v2077 = vmax.f32 %v1894, 0.0
    %v2078 = vmax.f32 %v1896, 0.0
    %v2079 = vmax.f32 %v1935, 0.0
    %v2080 = vmax.f32 %v1937, 0.0
    %v2081 = vmax.f32 %v1976, 0.0
    %v2082 = vmax.f32 %v1978, 0.0
    %v2083 = vmax.f32 %v2017, 0.0
    %v2084 = vmax.f32 %v2019, 0.0
    %v2085 = vmax.f32 %v2058, 0.0
    %v2086 = vld [vmem:[%s3] sm:$0xff]
    %v2087 = vld [vmem:[%s3 + $0x8] sm:$0xff]
    %v2088 = vld [vmem:[%s3 + $0x10] sm:$0xff]
    %v2089 = vld [vmem:[%s3 + $0x18] sm:$0xff]
    %v2090 = vld [vmem:[%s3 + $0x20] sm:$0xff]
    %v2091 = vld [vmem:[%s3 + $0x28] sm:$0xff]
    %v2092 = vld [vmem:[%s3 + $0x30] sm:$0xff]
    %v2093 = vld [vmem:[%s3 + $0x38] sm:$0xff]
    %v2094 = vld [vmem:[%s3 + $0x40] sm:$0xff]
    %v2095 = vld [vmem:[%s3 + $0x48] sm:$0xff]
    %v2096 = vld [vmem:[%s3 + $0x50] sm:$0xff]
    %v2097 = vld [vmem:[%s3 + $0x58] sm:$0xff]
    %v2098 = vld [vmem:[%s3 + $0x60] sm:$0xff]
    %v2099 = vld [vmem:[%s3 + $0x68] sm:$0xff]
    %v2100 = vld [vmem:[%s3 + $0x70] sm:$0xff]
    %v2101 = vld [vmem:[%s3 + $0x78] sm:$0xff]
    %v2102 = vld [vmem:[%s3 + $0x80] sm:$0xff]
    %v2103 = vld [vmem:[%s3 + $0x88] sm:$0xff]
    %v2104 = vld [vmem:[%s3 + $0x90] sm:$0xff]
    %v2105 = vld [vmem:[%s3 + $0x98] sm:$0xff]
    %v2106 = vld [vmem:[%s3 + $0xa0] sm:$0xff]
    %v2107 = vld [vmem:[%s3 + $0xa8] sm:$0xff]
    %v2108 = vld [vmem:[%s3 + $0xb0] sm:$0xff]
    %v2109 = vld [vmem:[%s3 + $0xb8] sm:$0xff]
    %v2110 = vld [vmem:[%s3 + $0xc0] sm:$0xff]
    %v2111 = vld [vmem:[%s3 + $0xc8] sm:$0xff]
    %v2112 = vld [vmem:[%s3 + $0xd0] sm:$0xff]
    %v2113 = vld [vmem:[%s3 + $0xd8] sm:$0xff]
    %v2114 = vld [vmem:[%s3 + $0xe0] sm:$0xff]
    %v2115 = vld [vmem:[%s3 + $0xe8] sm:$0xff]
    %v2116 = vld [vmem:[%s3 + $0xf0] sm:$0xff]
    %v2117 = vld [vmem:[%s3 + $0xf8] sm:$0xff]
    %v2118 = vld [vmem:[%s3 + $0x100] sm:$0xff]
    %v2119 = vld [vmem:[%s3 + $0x108] sm:$0xff]
    %v2120 = vld [vmem:[%s3 + $0x110] sm:$0xff]
    %v2121 = vld [vmem:[%s3 + $0x118] sm:$0xff]
    %v2122 = vld [vmem:[%s3 + $0x120] sm:$0xff]
    %v2123 = vld [vmem:[%s3 + $0x128] sm:$0xff]
    %v2124 = vld [vmem:[%s3 + $0x130] sm:$0xff]
    %v2125 = vld [vmem:[%s3 + $0x138] sm:$0xff]
    %v2126 = vld [vmem:[%s3 + $0x140] sm:$0xff]
    %v2127 = vld [vmem:[%s3 + $0x148] sm:$0xff]
    %v2128 = vld [vmem:[%s3 + $0x150] sm:$0xff]
    %v2129 = vld [vmem:[%s3 + $0x158] sm:$0xff]
    %v2130 = vld [vmem:[%s3 + $0x160] sm:$0xff]
    %v2131 = vld [vmem:[%s3 + $0x168] sm:$0xff]
    %v2132 = vld [vmem:[%s3 + $0x170] sm:$0xff]
    %v2133 = vld [vmem:[%s3 + $0x178] sm:$0xff]
    %v2134 = vld [vmem:[%s3 + $0x180] sm:$0xff]
    %v2135 = vld [vmem:[%s3 + $0x188] sm:$0xff]
    %v2136 = vld [vmem:[%s3 + $0x190] sm:$0xff]
    %v2137 = vld [vmem:[%s3 + $0x198] sm:$0xff]
    %v2138 = vld [vmem:[%s3 + $0x1a0] sm:$0xff]
    %v2139 = vld [vmem:[%s3 + $0x1a8] sm:$0xff]
    %v2140 = vld [vmem:[%s3 + $0x1b0] sm:$0xff]
    %v2141 = vld [vmem:[%s3 + $0x1b8] sm:$0xff]
    %v2142 = vld [vmem:[%s3 + $0x1c0] sm:$0xff]
    %v2143 = vld [vmem:[%s3 + $0x1c8] sm:$0xff]
    %v2144 = vld [vmem:[%s3 + $0x1d0] sm:$0xff]
    %v2145 = vld [vmem:[%s3 + $0x1d8] sm:$0xff]
    %v2146 = vld [vmem:[%s3 + $0x1e0] sm:$0xff]
    %v2147 = vld [vmem:[%s3 + $0x1e8] sm:$0xff]
    %v2148 = vld [vmem:[%s3 + $0x1f0] sm:$0xff]
    %v2149 = vld [vmem:[%s3 + $0x1f8] sm:$0xff]
    %v2150 = vld [vmem:[%s3 + $0x200] sm:$0xff]
    %v2151 = vld [vmem:[%s3 + $0x208] sm:$0xff]
    %v2152 = vld [vmem:[%s3 + $0x210] sm:$0xff]
    %v2153 = vld [vmem:[%s3 + $0x218] sm:$0xff]
    %v2154 = vld [vmem:[%s3 + $0x220] sm:$0xff]
    %v2155 = vld [vmem:[%s3 + $0x228] sm:$0xff]
    %v2156 = vld [vmem:[%s3 + $0x230] sm:$0xff]
    %v2157 = vld [vmem:[%s3 + $0x238] sm:$0xff]
    %v2158 = vld [vmem:[%s3 + $0x240] sm:$0xff]
    %v2159 = vld [vmem:[%s3 + $0x248] sm:$0xff]
    %v2160 = vld [vmem:[%s3 + $0x250] sm:$0xff]
    %v2161 = vld [vmem:[%s3 + $0x258] sm:$0xff]
    %v2162 = vld [vmem:[%s3 + $0x260] sm:$0xff]
    %v2163 = vld [vmem:[%s3 + $0x268] sm:$0xff]
    %v2164 = vld [vmem:[%s3 + $0x270] sm:$0xff]
    %v2165 = vld [vmem:[%s3 + $0x278] sm:$0xff]
    %v2166 = vld [vmem:[%s3 + $0x280] sm:$0xff]
    %v2167 = vld [vmem:[%s3 + $0x288] sm:$0xff]
    %v2168 = vld [vmem:[%s3 + $0x290] sm:$0xff]
    %v2169 = vld [vmem:[%s3 + $0x298] sm:$0xff]
    %v2170 = vld [vmem:[%s3 + $0x2a0] sm:$0xff]
    %v2171 = vld [vmem:[%s3 + $0x2a8] sm:$0xff]
    %v2172 = vld [vmem:[%s3 + $0x2b0] sm:$0xff]
    %v2173 = vld [vmem:[%s3 + $0x2b8] sm:$0xff]
    %v2174 = vld [vmem:[%s3 + $0x2c0] sm:$0xff]
    %v2175 = vld [vmem:[%s3 + $0x2c8] sm:$0xff]
    %v2176 = vld [vmem:[%s3 + $0x2d0] sm:$0xff]
    %v2177 = vld [vmem:[%s3 + $0x2d8] sm:$0xff]
    %v2178 = vld [vmem:[%s3 + $0x2e0] sm:$0xff]
    %v2179 = vld [vmem:[%s3 + $0x2e8] sm:$0xff]
    %v2180 = vld [vmem:[%s3 + $0x2f0] sm:$0xff]
    %v2181 = vld [vmem:[%s3 + $0x2f8] sm:$0xff]
    %v2182 = vld [vmem:[%s3 + $0x300] sm:$0xff]
    %v2183 = vld [vmem:[%s3 + $0x308] sm:$0xff]
    %v2184 = vld [vmem:[%s3 + $0x310] sm:$0xff]
    %v2185 = vld [vmem:[%s3 + $0x318] sm:$0xff]
    %v2186 = vld [vmem:[%s3 + $0x320] sm:$0xff]
    %v2187 = vld [vmem:[%s3 + $0x328] sm:$0xff]
    %v2188 = vld [vmem:[%s3 + $0x330] sm:$0xff]
    %v2189 = vld [vmem:[%s3 + $0x338] sm:$0xff]
    %v2190 = vld [vmem:[%s3 + $0x340] sm:$0xff]
    %v2191 = vld [vmem:[%s3 + $0x348] sm:$0xff]
    %v2192 = vld [vmem:[%s3 + $0x350] sm:$0xff]
    %v2193 = vld [vmem:[%s3 + $0x358] sm:$0xff]
    %v2194 = vld [vmem:[%s3 + $0x360] sm:$0xff]
    %v2195 = vld [vmem:[%s3 + $0x368] sm:$0xff]
    %v2196 = vld [vmem:[%s3 + $0x370] sm:$0xff]
    %v2197 = vld [vmem:[%s3 + $0x378] sm:$0xff]
    %v2198 = vld [vmem:[%s3 + $0x380] sm:$0xff]
    %v2199 = vld [vmem:[%s3 + $0x388] sm:$0xff]
    %v2200 = vld [vmem:[%s3 + $0x390] sm:$0xff]
    %v2201 = vld [vmem:[%s3 + $0x398] sm:$0xff]
    %v2202 = vld [vmem:[%s3 + $0x3a0] sm:$0xff]
    %v2203 = vld [vmem:[%s3 + $0x3a8] sm:$0xff]
    %v2204 = vld [vmem:[%s3 + $0x3b0] sm:$0xff]
    %v2205 = vld [vmem:[%s3 + $0x3b8] sm:$0xff]
    %v2206 = vld [vmem:[%s3 + $0x3c0] sm:$0xff]
    %v2207 = vld [vmem:[%s3 + $0x3c8] sm:$0xff]
    %v2208 = vld [vmem:[%s3 + $0x3d0] sm:$0xff]
    %v2209 = vld [vmem:[%s3 + $0x3d8] sm:$0xff]
    %v2210 = vld [vmem:[%s3 + $0x3e0] sm:$0xff]
    %v2211 = vld [vmem:[%s3 + $0x3e8] sm:$0xff]
    %v2212 = vld [vmem:[%s3 + $0x3f0] sm:$0xff]
    %v2213 = vld [vmem:[%s3 + $0x3f8] sm:$0xff]
    %v2214 = vld [vmem:[%s3 + $0x400] sm:$0xff]
    %v2215 = vld [vmem:[%s3 + $0x408] sm:$0xff]
    %v2216 = vld [vmem:[%s3 + $0x410] sm:$0xff]
    %v2217 = vld [vmem:[%s3 + $0x418] sm:$0xff]
    %v2218 = vld [vmem:[%s3 + $0x420] sm:$0xff]
    %v2219 = vld [vmem:[%s3 + $0x428] sm:$0xff]
    %v2220 = vld [vmem:[%s3 + $0x430] sm:$0xff]
    %v2221 = vld [vmem:[%s3 + $0x438] sm:$0xff]
    %v2222 = vld [vmem:[%s3 + $0x440] sm:$0xff]
    %v2223 = vld [vmem:[%s3 + $0x448] sm:$0xff]
    %v2224 = vld [vmem:[%s3 + $0x450] sm:$0xff]
    %v2225 = vld [vmem:[%s3 + $0x458] sm:$0xff]
    %v2226 = vld [vmem:[%s3 + $0x460] sm:$0xff]
    %v2227 = vld [vmem:[%s3 + $0x468] sm:$0xff]
    %v2228 = vld [vmem:[%s3 + $0x470] sm:$0xff]
    %v2229 = vld [vmem:[%s3 + $0x478] sm:$0xff]
    %v2230 = vld [vmem:[%s3 + $0x480] sm:$0xff]
    %v2231 = vld [vmem:[%s3 + $0x488] sm:$0xff]
    %v2232 = vld [vmem:[%s3 + $0x490] sm:$0xff]
    %v2233 = vld [vmem:[%s3 + $0x498] sm:$0xff]
    %v2234 = vld [vmem:[%s3 + $0x4a0] sm:$0xff]
    %v2235 = vld [vmem:[%s3 + $0x4a8] sm:$0xff]
    %v2236 = vld [vmem:[%s3 + $0x4b0] sm:$0xff]
    %v2237 = vld [vmem:[%s3 + $0x4b8] sm:$0xff]
    %v2238 = vld [vmem:[%s3 + $0x4c0] sm:$0xff]
    %v2239 = vld [vmem:[%s3 + $0x4c8] sm:$0xff]
    %v2240 = vld [vmem:[%s3 + $0x4d0] sm:$0xff]
    %v2241 = vld [vmem:[%s3 + $0x4d8] sm:$0xff]
    %v2242 = vld [vmem:[%s3 + $0x4e0] sm:$0xff]
    %v2243 = vld [vmem:[%s3 + $0x4e8] sm:$0xff]
    %v2244 = vld [vmem:[%s3 + $0x4f0] sm:$0xff]
    %v2245 = vld [vmem:[%s3 + $0x4f8] sm:$0xff]
    %v2246 = vld [vmem:[%s3 + $0x500] sm:$0xff]
    %v2247 = vld [vmem:[%s3 + $0x508] sm:$0xff]
    %v2248 = vld [vmem:[%s3 + $0x510] sm:$0xff]
    %v2249 = vld [vmem:[%s3 + $0x518] sm:$0xff]
    %v2250 = vld [vmem:[%s3 + $0x520] sm:$0xff]
    %v2251 = vld [vmem:[%s3 + $0x528] sm:$0xff]
    %v2252 = vld [vmem:[%s3 + $0x530] sm:$0xff]
    %v2253 = vld [vmem:[%s3 + $0x538] sm:$0xff]
    %v2254 = vld [vmem:[%s3 + $0x540] sm:$0xff]
    %v2255 = vld [vmem:[%s3 + $0x548] sm:$0xff]
    %v2256 = vld [vmem:[%s3 + $0x550] sm:$0xff]
    %v2257 = vld [vmem:[%s3 + $0x558] sm:$0xff]
    %v2258 = vld [vmem:[%s3 + $0x560] sm:$0xff]
    %v2259 = vld [vmem:[%s3 + $0x568] sm:$0xff]
    %v2260 = vld [vmem:[%s3 + $0x570] sm:$0xff]
    %v2261 = vld [vmem:[%s3 + $0x578] sm:$0xff]
    %v2262 = vld [vmem:[%s3 + $0x580] sm:$0xff]
    %v2263 = vld [vmem:[%s3 + $0x588] sm:$0xff]
    %v2264 = vld [vmem:[%s3 + $0x590] sm:$0xff]
    %v2265 = vld [vmem:[%s3 + $0x598] sm:$0xff]
    %v2266 = vld [vmem:[%s3 + $0x5a0] sm:$0xff]
    %v2267 = vld [vmem:[%s3 + $0x5a8] sm:$0xff]
    %v2268 = vld [vmem:[%s3 + $0x5b0] sm:$0xff]
    %v2269 = vld [vmem:[%s3 + $0x5b8] sm:$0xff]
    %v2270 = vld [vmem:[%s3 + $0x5c0] sm:$0xff]
    %v2271 = vld [vmem:[%s3 + $0x5c8] sm:$0xff]
    %v2272 = vld [vmem:[%s3 + $0x5d0] sm:$0xff]
    %v2273 = vld [vmem:[%s3 + $0x5d8] sm:$0xff]
    %v2274 = vld [vmem:[%s3 + $0x5e0] sm:$0xff]
    %v2275 = vld [vmem:[%s3 + $0x5e8] sm:$0xff]
    %v2276 = vld [vmem:[%s3 + $0x5f0] sm:$0xff]
    %v2277 = vld [vmem:[%s3 + $0x5f8] sm:$0xff]
    %v2278 = vld [vmem:[%s3 + $0x600] sm:$0xff]
    %v2279 = vld [vmem:[%s3 + $0x608] sm:$0xff]
    %v2280 = vld [vmem:[%s3 + $0x610] sm:$0xff]
    %v2281 = vld [vmem:[%s3 + $0x618] sm:$0xff]
    %v2282 = vld [vmem:[%s3 + $0x620] sm:$0xff]
    %v2283 = vld [vmem:[%s3 + $0x628] sm:$0xff]
    %v2284 = vld [vmem:[%s3 + $0x630] sm:$0xff]
    %v2285 = vld [vmem:[%s3 + $0x638] sm:$0xff]
    %v2286 = vld [vmem:[%s3 + $0x640] sm:$0xff]
    %v2287 = vld [vmem:[%s3 + $0x648] sm:$0xff]
    %v2288 = vld [vmem:[%s3 + $0x650] sm:$0xff]
    %v2289 = vld [vmem:[%s3 + $0x658] sm:$0xff]
    %v2290 = vld [vmem:[%s3 + $0x660] sm:$0xff]
    %v2291 = vld [vmem:[%s3 + $0x668] sm:$0xff]
    %v2292 = vld [vmem:[%s3 + $0x670] sm:$0xff]
    %v2293 = vld [vmem:[%s3 + $0x678] sm:$0xff]
    %v2294 = vld [vmem:[%s3 + $0x680] sm:$0xff]
    %v2295 = vld [vmem:[%s3 + $0x688] sm:$0xff]
    %v2296 = vld [vmem:[%s3 + $0x690] sm:$0xff]
    %v2297 = vld [vmem:[%s3 + $0x698] sm:$0xff]
    %v2298 = vld [vmem:[%s3 + $0x6a0] sm:$0xff]
    %v2299 = vld [vmem:[%s3 + $0x6a8] sm:$0xff]
    %v2300 = vld [vmem:[%s3 + $0x6b0] sm:$0xff]
    %v2301 = vld [vmem:[%s3 + $0x6b8] sm:$0xff]
    %v2302 = vld [vmem:[%s3 + $0x6c0] sm:$0xff]
    %v2303 = vld [vmem:[%s3 + $0x6c8] sm:$0xff]
    %v2304 = vld [vmem:[%s3 + $0x6d0] sm:$0xff]
    %v2305 = vld [vmem:[%s3 + $0x6d8] sm:$0xff]
    %v2306 = vld [vmem:[%s3 + $0x6e0] sm:$0xff]
    %v2307 = vld [vmem:[%s3 + $0x6e8] sm:$0xff]
    %v2308 = vld [vmem:[%s3 + $0x6f0] sm:$0xff]
    %v2309 = vld [vmem:[%s3 + $0x6f8] sm:$0xff]
    %v2310 = vld [vmem:[%s3 + $0x700] sm:$0xff]
    %v2311 = vld [vmem:[%s3 + $0x708] sm:$0xff]
    %v2312 = vld [vmem:[%s3 + $0x710] sm:$0xff]
    %v2313 = vld [vmem:[%s3 + $0x718] sm:$0xff]
    %v2314 = vld [vmem:[%s3 + $0x720] sm:$0xff]
    %v2315 = vld [vmem:[%s3 + $0x728] sm:$0xff]
    %v2316 = vld [vmem:[%s3 + $0x730] sm:$0xff]
    %v2317 = vld [vmem:[%s3 + $0x738] sm:$0xff]
    %v2318 = vld [vmem:[%s3 + $0x740] sm:$0xff]
    %v2319 = vld [vmem:[%s3 + $0x748] sm:$0xff]
    %v2320 = vld [vmem:[%s3 + $0x750] sm:$0xff]
    %v2321 = vld [vmem:[%s3 + $0x758] sm:$0xff]
    %v2322 = vld [vmem:[%s3 + $0x760] sm:$0xff]
    %v2323 = vld [vmem:[%s3 + $0x768] sm:$0xff]
    %v2324 = vld [vmem:[%s3 + $0x770] sm:$0xff]
    %v2325 = vld [vmem:[%s3 + $0x778] sm:$0xff]
    %v2326 = vld [vmem:[%s3 + $0x780] sm:$0xff]
    %v2327 = vld [vmem:[%s3 + $0x788] sm:$0xff]
    %v2328 = vld [vmem:[%s3 + $0x790] sm:$0xff]
    %v2329 = vld [vmem:[%s3 + $0x798] sm:$0xff]
    %v2330 = vld [vmem:[%s3 + $0x7a0] sm:$0xff]
    %v2331 = vld [vmem:[%s3 + $0x7a8] sm:$0xff]
    %v2332 = vld [vmem:[%s3 + $0x7b0] sm:$0xff]
    %v2333 = vld [vmem:[%s3 + $0x7b8] sm:$0xff]
    %v2334 = vld [vmem:[%s3 + $0x7c0] sm:$0xff]
    %v2335 = vld [vmem:[%s3 + $0x7c8] sm:$0xff]
    %v2336 = vld [vmem:[%s3 + $0x7d0] sm:$0xff]
    %v2337 = vld [vmem:[%s3 + $0x7d8] sm:$0xff]
    %v2338 = vld [vmem:[%s3 + $0x7e0] sm:$0xff]
    %v2339 = vld [vmem:[%s3 + $0x7e8] sm:$0xff]
    %v2340 = vld [vmem:[%s3 + $0x7f0] sm:$0xff]
    %v2341 = vld [vmem:[%s3 + $0x7f8] sm:$0xff]
    %v2342 = vld [vmem:[%s3 + $0x800] sm:$0xff]
    %v2343 = vld [vmem:[%s3 + $0x808] sm:$0xff]
    %v2344 = vld [vmem:[%s3 + $0x810] sm:$0xff]
    %v2345 = vld [vmem:[%s3 + $0x818] sm:$0xff]
    %v2346 = vld [vmem:[%s3 + $0x820] sm:$0xff]
    %v2347 = vld [vmem:[%s3 + $0x828] sm:$0xff]
    %v2348 = vld [vmem:[%s3 + $0x830] sm:$0xff]
    %v2349 = vld [vmem:[%s3 + $0x838] sm:$0xff]
    %v2350 = vld [vmem:[%s3 + $0x840] sm:$0xff]
    %v2351 = vld [vmem:[%s3 + $0x848] sm:$0xff]
    %v2352 = vld [vmem:[%s3 + $0x850] sm:$0xff]
    %v2353 = vld [vmem:[%s3 + $0x858] sm:$0xff]
    %v2354 = vld [vmem:[%s3 + $0x860] sm:$0xff]
    %v2355 = vld [vmem:[%s3 + $0x868] sm:$0xff]
    %v2356 = vld [vmem:[%s3 + $0x870] sm:$0xff]
    %v2357 = vld [vmem:[%s3 + $0x878] sm:$0xff]
    %v2358 = vld [vmem:[%s3 + $0x880] sm:$0xff]
    %v2359 = vld [vmem:[%s3 + $0x888] sm:$0xff]
    %v2360 = vld [vmem:[%s3 + $0x890] sm:$0xff]
    %v2361 = vld [vmem:[%s3 + $0x898] sm:$0xff]
    %v2362 = vld [vmem:[%s3 + $0x8a0] sm:$0xff]
    %v2363 = vld [vmem:[%s3 + $0x8a8] sm:$0xff]
    %v2364 = vld [vmem:[%s3 + $0x8b0] sm:$0xff]
    %v2365 = vld [vmem:[%s3 + $0x8b8] sm:$0xff]
    %v2366 = vld [vmem:[%s3 + $0x8c0] sm:$0xff]
    %v2367 = vld [vmem:[%s3 + $0x8c8] sm:$0xff]
    %v2368 = vld [vmem:[%s3 + $0x8d0] sm:$0xff]
    %v2369 = vld [vmem:[%s3 + $0x8d8] sm:$0xff]
    %v2370 = vld [vmem:[%s3 + $0x8e0] sm:$0xff]
    %v2371 = vld [vmem:[%s3 + $0x8e8] sm:$0xff]
    %v2372 = vld [vmem:[%s3 + $0x8f0] sm:$0xff]
    %v2373 = vld [vmem:[%s3 + $0x8f8] sm:$0xff]
    %v2374 = vld [vmem:[%s3 + $0x900] sm:$0xff]
    %v2375 = vld [vmem:[%s3 + $0x908] sm:$0xff]
    %v2376 = vld [vmem:[%s3 + $0x910] sm:$0xff]
    %v2377 = vld [vmem:[%s3 + $0x918] sm:$0xff]
    %v2378 = vld [vmem:[%s3 + $0x920] sm:$0xff]
    %v2379 = vld [vmem:[%s3 + $0x928] sm:$0xff]
    %v2380 = vld [vmem:[%s3 + $0x930] sm:$0xff]
    %v2381 = vld [vmem:[%s3 + $0x938] sm:$0xff]
    %v2382 = vld [vmem:[%s3 + $0x940] sm:$0xff]
    %v2383 = vld [vmem:[%s3 + $0x948] sm:$0xff]
    %v2384 = vld [vmem:[%s3 + $0x950] sm:$0xff]
    %v2385 = vld [vmem:[%s3 + $0x958] sm:$0xff]
    %v2386 = vld [vmem:[%s3 + $0x960] sm:$0xff]
    %v2387 = vld [vmem:[%s3 + $0x968] sm:$0xff]
    %v2388 = vld [vmem:[%s3 + $0x970] sm:$0xff]
    %v2389 = vld [vmem:[%s3 + $0x978] sm:$0xff]
    %v2390 = vld [vmem:[%s3 + $0x980] sm:$0xff]
    %v2391 = vld [vmem:[%s3 + $0x988] sm:$0xff]
    %v2392 = vld [vmem:[%s3 + $0x990] sm:$0xff]
    %v2393 = vld [vmem:[%s3 + $0x998] sm:$0xff]
    %v2394 = vld [vmem:[%s3 + $0x9a0] sm:$0xff]
    %v2395 = vld [vmem:[%s3 + $0x9a8] sm:$0xff]
    %v2396 = vld [vmem:[%s3 + $0x9b0] sm:$0xff]
    %v2397 = vld [vmem:[%s3 + $0x9b8] sm:$0xff]
    %v2398 = vld [vmem:[%s3 + $0x9c0] sm:$0xff]
    %v2399 = vld [vmem:[%s3 + $0x9c8] sm:$0xff]
    %v2400 = vld [vmem:[%s3 + $0x9d0] sm:$0xff]
    %v2401 = vld [vmem:[%s3 + $0x9d8] sm:$0xff]
    %v2402 = vld [vmem:[%s3 + $0x9e0] sm:$0xff]
    %v2403 = vld [vmem:[%s3 + $0x9e8] sm:$0xff]
    %v2404 = vld [vmem:[%s3 + $0x9f0] sm:$0xff]
    %v2405 = vld [vmem:[%s3 + $0x9f8] sm:$0xff]
    %v2406 = vld [vmem:[%s3 + $0xa00] sm:$0xff]
    %v2407 = vld [vmem:[%s3 + $0xa08] sm:$0xff]
    %v2408 = vld [vmem:[%s3 + $0xa10] sm:$0xff]
    %v2409 = vld [vmem:[%s3 + $0xa18] sm:$0xff]
    %v2410 = vld [vmem:[%s3 + $0xa20] sm:$0xff]
    %v2411 = vld [vmem:[%s3 + $0xa28] sm:$0xff]
    %v2412 = vld [vmem:[%s3 + $0xa30] sm:$0xff]
    %v2413 = vld [vmem:[%s3 + $0xa38] sm:$0xff]
    %v2414 = vld [vmem:[%s3 + $0xa40] sm:$0xff]
    %v2415 = vld [vmem:[%s3 + $0xa48] sm:$0xff]
    %v2416 = vld [vmem:[%s3 + $0xa50] sm:$0xff]
    %v2417 = vld [vmem:[%s3 + $0xa58] sm:$0xff]
    %v2418 = vld [vmem:[%s3 + $0xa60] sm:$0xff]
    %v2419 = vld [vmem:[%s3 + $0xa68] sm:$0xff]
    %v2420 = vld [vmem:[%s3 + $0xa70] sm:$0xff]
    %v2421 = vld [vmem:[%s3 + $0xa78] sm:$0xff]
    %v2422 = vld [vmem:[%s3 + $0xa80] sm:$0xff]
    %v2423 = vld [vmem:[%s3 + $0xa88] sm:$0xff]
    %v2424 = vld [vmem:[%s3 + $0xa90] sm:$0xff]
    %v2425 = vld [vmem:[%s3 + $0xa98] sm:$0xff]
    %v2426 = vld [vmem:[%s3 + $0xaa0] sm:$0xff]
    %v2427 = vld [vmem:[%s3 + $0xaa8] sm:$0xff]
    %v2428 = vld [vmem:[%s3 + $0xab0] sm:$0xff]
    %v2429 = vld [vmem:[%s3 + $0xab8] sm:$0xff]
    %v2430 = vld [vmem:[%s3 + $0xac0] sm:$0xff]
    %v2431 = vld [vmem:[%s3 + $0xac8] sm:$0xff]
    %v2432 = vld [vmem:[%s3 + $0xad0] sm:$0xff]
    %v2433 = vld [vmem:[%s3 + $0xad8] sm:$0xff]
    %v2434 = vld [vmem:[%s3 + $0xae0] sm:$0xff]
    %v2435 = vld [vmem:[%s3 + $0xae8] sm:$0xff]
    %v2436 = vld [vmem:[%s3 + $0xaf0] sm:$0xff]
    %v2437 = vld [vmem:[%s3 + $0xaf8] sm:$0xff]
    %v2438 = vld [vmem:[%s3 + $0xb00] sm:$0xff]
    %v2439 = vld [vmem:[%s3 + $0xb08] sm:$0xff]
    %v2440 = vld [vmem:[%s3 + $0xb10] sm:$0xff]
    %v2441 = vld [vmem:[%s3 + $0xb18] sm:$0xff]
    %v2442 = vld [vmem:[%s3 + $0xb20] sm:$0xff]
    %v2443 = vld [vmem:[%s3 + $0xb28] sm:$0xff]
    %v2444 = vld [vmem:[%s3 + $0xb30] sm:$0xff]
    %v2445 = vld [vmem:[%s3 + $0xb38] sm:$0xff]
    %v2446 = vld [vmem:[%s3 + $0xb40] sm:$0xff]
    %v2447 = vld [vmem:[%s3 + $0xb48] sm:$0xff]
    %v2448 = vld [vmem:[%s3 + $0xb50] sm:$0xff]
    %v2449 = vld [vmem:[%s3 + $0xb58] sm:$0xff]
    %v2450 = vld [vmem:[%s3 + $0xb60] sm:$0xff]
    %v2451 = vld [vmem:[%s3 + $0xb68] sm:$0xff]
    %v2452 = vld [vmem:[%s3 + $0xb70] sm:$0xff]
    %v2453 = vld [vmem:[%s3 + $0xb78] sm:$0xff]
    %v2454 = vld [vmem:[%s4] sm:$0x1]
    %v2456 = vlaneseq
    %v2457 = vshrl.u32 %v2456, 7
    %v2458 = vsub.s32 0, %v2457
    %v2459 = vrot.slane %v2454, %v2458
    %2461 = vmatprep.subr.mxu0 0.0
    %2462 = vmatpush1.msra.mxu0 %v2086
    %2463 = vmatprep.subr.mxu0 0.0
    %2464 = vmatpush1.msra.mxu0 %v2087
    %2465 = vmatprep.subr.mxu0 0.0
    %2466 = vmatpush1.msra.mxu0 %v2088
    %2467 = vmatprep.subr.mxu0 0.0
    %2468 = vmatpush1.msra.mxu0 %v2089
    %2469 = vmatprep.subr.mxu0 0.0
    %2470 = vmatpush1.msra.mxu0 %v2090
    %2471 = vmatprep.subr.mxu0 0.0
    %2472 = vmatpush1.msra.mxu0 %v2091
    %2473 = vmatprep.subr.mxu0 0.0
    %2474 = vmatpush1.msra.mxu0 %v2092
    %2475 = vmatprep.subr.mxu0 0.0
    %2476 = vmatpush1.msra.mxu0 %v2093
    %2477 = vmatprep.subr.mxu0 0.0
    %2478 = vmatpush1.msra.mxu0 %v2094
    %2479 = vmatprep.subr.mxu0 0.0
    %2480 = vmatpush1.msra.mxu0 %v2095
    %2481 = vmatprep.subr.mxu0 0.0
    %2482 = vmatpush1.msra.mxu0 %v2096
    %2483 = vmatprep.subr.mxu0 0.0
    %2484 = vmatpush1.msra.mxu0 %v2097
    %2485 = vmatprep.subr.mxu0 0.0
    %2486 = vmatpush1.msra.mxu0 %v2098
    %2487 = vmatprep.subr.mxu0 0.0
    %2488 = vmatpush1.msra.mxu0 %v2099
    %2489 = vmatprep.subr.mxu0 0.0
    %2490 = vmatpush1.msra.mxu0 %v2100
    %2491 = vmatprep.subr.mxu0 0.0
    %2492 = vmatpush1.msra.mxu0 %v2101
    %2493 = vmatprep.subr.mxu0 0.0
    %2494 = vmatpush1.msra.mxu0 %v2102
    %2495 = vmatprep.subr.mxu0 0.0
    %2496 = vmatpush1.msra.mxu0 %v2103
    %2497 = vmatprep.subr.mxu0 0.0
    %2498 = vmatpush1.msra.mxu0 %v2104
    %2499 = vmatprep.subr.mxu0 0.0
    %2500 = vmatpush1.msra.mxu0 %v2105
    %2501 = vmatprep.subr.mxu0 0.0
    %2502 = vmatpush1.msra.mxu0 %v2106
    %2503 = vmatprep.subr.mxu0 0.0
    %2504 = vmatpush1.msra.mxu0 %v2107
    %2505 = vmatprep.subr.mxu0 0.0
    %2506 = vmatpush1.msra.mxu0 %v2108
    %2507 = vmatprep.subr.mxu0 0.0
    %2508 = vmatpush1.msra.mxu0 %v2109
    %2509 = vmatprep.subr.mxu0 0.0
    %2510 = vmatpush1.msra.mxu0 %v2110
    %2511 = vmatprep.subr.mxu0 0.0
    %2512 = vmatpush1.msra.mxu0 %v2111
    %2513 = vmatprep.subr.mxu0 0.0
    %2514 = vmatpush1.msra.mxu0 %v2112
    %2515 = vmatprep.subr.mxu0 0.0
    %2516 = vmatpush1.msra.mxu0 %v2113
    %2517 = vmatprep.subr.mxu0 0.0
    %2518 = vmatpush1.msra.mxu0 %v2114
    %2519 = vmatprep.subr.mxu0 0.0
    %2520 = vmatpush1.msra.mxu0 %v2115
    %2521 = vmatprep.subr.mxu0 0.0
    %2522 = vmatpush1.msra.mxu0 %v2116
    %2523 = vmatprep.subr.mxu0 0.0
    %2524 = vmatpush1.msra.mxu0 %v2117
    %2525 = vmatprep.mubr.f32.mxu0 %v2064
    %2526 = vmatmul.mubr.f32.gmra.mrb[0].mxu0 %v2063
    %v2527 = vpop.f32.mrb[0].mxu0
    %v2528 = vadd.f32 %v2459, %v2527
    %v2529 = vpop.f32.mrb[0].mxu0
    %2530 = vdwg.mxu0
    %2531 = vmatprep.subr.mxu0 0.0
    %2532 = vmatpush1.msra.mxu0 %v2118
    %2533 = vmatprep.subr.mxu0 0.0
    %2534 = vmatpush1.msra.mxu0 %v2119
    %2535 = vmatprep.subr.mxu0 0.0
    %2536 = vmatpush1.msra.mxu0 %v2120
    %2537 = vmatprep.subr.mxu0 0.0
    %2538 = vmatpush1.msra.mxu0 %v2121
    %2539 = vmatprep.subr.mxu0 0.0
    %2540 = vmatpush1.msra.mxu0 %v2122
    %2541 = vmatprep.subr.mxu0 0.0
    %2542 = vmatpush1.msra.mxu0 %v2123
    %2543 = vmatprep.subr.mxu0 0.0
    %2544 = vmatpush1.msra.mxu0 %v2124
    %2545 = vmatprep.subr.mxu0 0.0
    %2546 = vmatpush1.msra.mxu0 %v2125
    %2547 = vmatprep.subr.mxu0 0.0
    %2548 = vmatpush1.msra.mxu0 %v2126
    %2549 = vmatprep.subr.mxu0 0.0
    %2550 = vmatpush1.msra.mxu0 %v2127
    %2551 = vmatprep.subr.mxu0 0.0
    %2552 = vmatpush1.msra.mxu0 %v2128
    %2553 = vmatprep.subr.mxu0 0.0
    %2554 = vmatpush1.msra.mxu0 %v2129
    %2555 = vmatprep.subr.mxu0 0.0
    %2556 = vmatpush1.msra.mxu0 %v2130
    %2557 = vmatprep.subr.mxu0 0.0
    %2558 = vmatpush1.msra.mxu0 %v2131
    %2559 = vmatprep.subr.mxu0 0.0
    %2560 = vmatpush1.msra.mxu0 %v2132
    %2561 = vmatprep.subr.mxu0 0.0
    %2562 = vmatpush1.msra.mxu0 %v2133
    %2563 = vmatprep.subr.mxu0 0.0
    %2564 = vmatpush1.msra.mxu0 %v2134
    %2565 = vmatprep.subr.mxu0 0.0
    %2566 = vmatpush1.msra.mxu0 %v2135
    %2567 = vmatprep.subr.mxu0 0.0
    %2568 = vmatpush1.msra.mxu0 %v2136
    %2569 = vmatprep.subr.mxu0 0.0
    %2570 = vmatpush1.msra.mxu0 %v2137
    %2571 = vmatprep.subr.mxu0 0.0
    %2572 = vmatpush1.msra.mxu0 %v2138
    %2573 = vmatprep.subr.mxu0 0.0
    %2574 = vmatpush1.msra.mxu0 %v2139
    %2575 = vmatprep.subr.mxu0 0.0
    %2576 = vmatpush1.msra.mxu0 %v2140
    %2577 = vmatprep.subr.mxu0 0.0
    %2578 = vmatpush1.msra.mxu0 %v2141
    %2579 = vmatprep.subr.mxu0 0.0
    %2580 = vmatpush1.msra.mxu0 %v2142
    %2581 = vmatprep.subr.mxu0 0.0
    %2582 = vmatpush1.msra.mxu0 %v2143
    %2583 = vmatprep.subr.mxu0 0.0
    %2584 = vmatpush1.msra.mxu0 %v2144
    %2585 = vmatprep.subr.mxu0 0.0
    %2586 = vmatpush1.msra.mxu0 %v2145
    %2587 = vmatprep.subr.mxu0 0.0
    %2588 = vmatpush1.msra.mxu0 %v2146
    %2589 = vmatprep.subr.mxu0 0.0
    %2590 = vmatpush1.msra.mxu0 %v2147
    %2591 = vmatprep.subr.mxu0 0.0
    %2592 = vmatpush1.msra.mxu0 %v2148
    %2593 = vmatprep.subr.mxu0 0.0
    %2594 = vmatpush1.msra.mxu0 %v2149
    %2595 = vmatprep.mubr.f32.mxu0 %v2066
    %2596 = vmatmul.mubr.f32.gmra.mrb[0].mxu0 %v2065
    %v2597 = vpop.f32.mrb[0].mxu0
    %v2598 = vadd.f32 %v2528, %v2597
    %v2599 = vpop.f32.mrb[0].mxu0
    %2600 = vdwg.mxu0
    %2601 = vmatprep.subr.mxu0 0.0
    %2602 = vmatpush1.msra.mxu0 %v2150
    %2603 = vmatprep.subr.mxu0 0.0
    %2604 = vmatpush1.msra.mxu0 %v2151
    %2605 = vmatprep.subr.mxu0 0.0
    %2606 = vmatpush1.msra.mxu0 %v2152
    %2607 = vmatprep.subr.mxu0 0.0
    %2608 = vmatpush1.msra.mxu0 %v2153
    %2609 = vmatprep.subr.mxu0 0.0
    %2610 = vmatpush1.msra.mxu0 %v2154
    %2611 = vmatprep.subr.mxu0 0.0
    %2612 = vmatpush1.msra.mxu0 %v2155
    %2613 = vmatprep.subr.mxu0 0.0
    %2614 = vmatpush1.msra.mxu0 %v2156
    %2615 = vmatprep.subr.mxu0 0.0
    %2616 = vmatpush1.msra.mxu0 %v2157
    %2617 = vmatprep.subr.mxu0 0.0
    %2618 = vmatpush1.msra.mxu0 %v2158
    %2619 = vmatprep.subr.mxu0 0.0
    %2620 = vmatpush1.msra.mxu0 %v2159
    %2621 = vmatprep.subr.mxu0 0.0
    %2622 = vmatpush1.msra.mxu0 %v2160
    %2623 = vmatprep.subr.mxu0 0.0
    %2624 = vmatpush1.msra.mxu0 %v2161
    %2625 = vmatprep.subr.mxu0 0.0
    %2626 = vmatpush1.msra.mxu0 %v2162
    %2627 = vmatprep.subr.mxu0 0.0
    %2628 = vmatpush1.msra.mxu0 %v2163
    %2629 = vmatprep.subr.mxu0 0.0
    %2630 = vmatpush1.msra.mxu0 %v2164
    %2631 = vmatprep.subr.mxu0 0.0
    %2632 = vmatpush1.msra.mxu0 %v2165
    %2633 = vmatprep.subr.mxu0 0.0
    %2634 = vmatpush1.msra.mxu0 %v2166
    %2635 = vmatprep.subr.mxu0 0.0
    %2636 = vmatpush1.msra.mxu0 %v2167
    %2637 = vmatprep.subr.mxu0 0.0
    %2638 = vmatpush1.msra.mxu0 %v2168
    %2639 = vmatprep.subr.mxu0 0.0
    %2640 = vmatpush1.msra.mxu0 %v2169
    %2641 = vmatprep.subr.mxu0 0.0
    %2642 = vmatpush1.msra.mxu0 %v2170
    %2643 = vmatprep.subr.mxu0 0.0
    %2644 = vmatpush1.msra.mxu0 %v2171
    %2645 = vmatprep.subr.mxu0 0.0
    %2646 = vmatpush1.msra.mxu0 %v2172
    %2647 = vmatprep.subr.mxu0 0.0
    %2648 = vmatpush1.msra.mxu0 %v2173
    %2649 = vmatprep.subr.mxu0 0.0
    %2650 = vmatpush1.msra.mxu0 %v2174
    %2651 = vmatprep.subr.mxu0 0.0
    %2652 = vmatpush1.msra.mxu0 %v2175
    %2653 = vmatprep.subr.mxu0 0.0
    %2654 = vmatpush1.msra.mxu0 %v2176
    %2655 = vmatprep.subr.mxu0 0.0
    %2656 = vmatpush1.msra.mxu0 %v2177
    %2657 = vmatprep.subr.mxu0 0.0
    %2658 = vmatpush1.msra.mxu0 %v2178
    %2659 = vmatprep.subr.mxu0 0.0
    %2660 = vmatpush1.msra.mxu0 %v2179
    %2661 = vmatprep.subr.mxu0 0.0
    %2662 = vmatpush1.msra.mxu0 %v2180
    %2663 = vmatprep.subr.mxu0 0.0
    %2664 = vmatpush1.msra.mxu0 %v2181
    %2665 = vmatprep.mubr.f32.mxu0 %v2068
    %2666 = vmatmul.mubr.f32.gmra.mrb[0].mxu0 %v2067
    %v2667 = vpop.f32.mrb[0].mxu0
    %v2668 = vadd.f32 %v2598, %v2667
    %v2669 = vpop.f32.mrb[0].mxu0
    %2670 = vdwg.mxu0
    %2671 = vmatprep.subr.mxu0 0.0
    %2672 = vmatpush1.msra.mxu0 %v2182
    %2673 = vmatprep.subr.mxu0 0.0
    %2674 = vmatpush1.msra.mxu0 %v2183
    %2675 = vmatprep.subr.mxu0 0.0
    %2676 = vmatpush1.msra.mxu0 %v2184
    %2677 = vmatprep.subr.mxu0 0.0
    %2678 = vmatpush1.msra.mxu0 %v2185
    %2679 = vmatprep.subr.mxu0 0.0
    %2680 = vmatpush1.msra.mxu0 %v2186
    %2681 = vmatprep.subr.mxu0 0.0
    %2682 = vmatpush1.msra.mxu0 %v2187
    %2683 = vmatprep.subr.mxu0 0.0
    %2684 = vmatpush1.msra.mxu0 %v2188
    %2685 = vmatprep.subr.mxu0 0.0
    %2686 = vmatpush1.msra.mxu0 %v2189
    %2687 = vmatprep.subr.mxu0 0.0
    %2688 = vmatpush1.msra.mxu0 %v2190
    %2689 = vmatprep.subr.mxu0 0.0
    %2690 = vmatpush1.msra.mxu0 %v2191
    %2691 = vmatprep.subr.mxu0 0.0
    %2692 = vmatpush1.msra.mxu0 %v2192
    %2693 = vmatprep.subr.mxu0 0.0
    %2694 = vmatpush1.msra.mxu0 %v2193
    %2695 = vmatprep.subr.mxu0 0.0
    %2696 = vmatpush1.msra.mxu0 %v2194
    %2697 = vmatprep.subr.mxu0 0.0
    %2698 = vmatpush1.msra.mxu0 %v2195
    %2699 = vmatprep.subr.mxu0 0.0
    %2700 = vmatpush1.msra.mxu0 %v2196
    %2701 = vmatprep.subr.mxu0 0.0
    %2702 = vmatpush1.msra.mxu0 %v2197
    %2703 = vmatprep.subr.mxu0 0.0
    %2704 = vmatpush1.msra.mxu0 %v2198
    %2705 = vmatprep.subr.mxu0 0.0
    %2706 = vmatpush1.msra.mxu0 %v2199
    %2707 = vmatprep.subr.mxu0 0.0
    %2708 = vmatpush1.msra.mxu0 %v2200
    %2709 = vmatprep.subr.mxu0 0.0
    %2710 = vmatpush1.msra.mxu0 %v2201
    %2711 = vmatprep.subr.mxu0 0.0
    %2712 = vmatpush1.msra.mxu0 %v2202
    %2713 = vmatprep.subr.mxu0 0.0
    %2714 = vmatpush1.msra.mxu0 %v2203
    %2715 = vmatprep.subr.mxu0 0.0
    %2716 = vmatpush1.msra.mxu0 %v2204
    %2717 = vmatprep.subr.mxu0 0.0
    %2718 = vmatpush1.msra.mxu0 %v2205
    %2719 = vmatprep.subr.mxu0 0.0
    %2720 = vmatpush1.msra.mxu0 %v2206
    %2721 = vmatprep.subr.mxu0 0.0
    %2722 = vmatpush1.msra.mxu0 %v2207
    %2723 = vmatprep.subr.mxu0 0.0
    %2724 = vmatpush1.msra.mxu0 %v2208
    %2725 = vmatprep.subr.mxu0 0.0
    %2726 = vmatpush1.msra.mxu0 %v2209
    %2727 = vmatprep.subr.mxu0 0.0
    %2728 = vmatpush1.msra.mxu0 %v2210
    %2729 = vmatprep.subr.mxu0 0.0
    %2730 = vmatpush1.msra.mxu0 %v2211
    %2731 = vmatprep.subr.mxu0 0.0
    %2732 = vmatpush1.msra.mxu0 %v2212
    %2733 = vmatprep.subr.mxu0 0.0
    %2734 = vmatpush1.msra.mxu0 %v2213
    %2735 = vmatprep.mubr.f32.mxu0 %v2070
    %2736 = vmatmul.mubr.f32.gmra.mrb[0].mxu0 %v2069
    %v2737 = vpop.f32.mrb[0].mxu0
    %v2738 = vadd.f32 %v2668, %v2737
    %v2739 = vpop.f32.mrb[0].mxu0
    %2740 = vdwg.mxu0
    %2741 = vmatprep.subr.mxu0 0.0
    %2742 = vmatpush1.msra.mxu0 %v2214
    %2743 = vmatprep.subr.mxu0 0.0
    %2744 = vmatpush1.msra.mxu0 %v2215
    %2745 = vmatprep.subr.mxu0 0.0
    %2746 = vmatpush1.msra.mxu0 %v2216
    %2747 = vmatprep.subr.mxu0 0.0
    %2748 = vmatpush1.msra.mxu0 %v2217
    %2749 = vmatprep.subr.mxu0 0.0
    %2750 = vmatpush1.msra.mxu0 %v2218
    %2751 = vmatprep.subr.mxu0 0.0
    %2752 = vmatpush1.msra.mxu0 %v2219
    %2753 = vmatprep.subr.mxu0 0.0
    %2754 = vmatpush1.msra.mxu0 %v2220
    %2755 = vmatprep.subr.mxu0 0.0
    %2756 = vmatpush1.msra.mxu0 %v2221
    %2757 = vmatprep.subr.mxu0 0.0
    %2758 = vmatpush1.msra.mxu0 %v2222
    %2759 = vmatprep.subr.mxu0 0.0
    %2760 = vmatpush1.msra.mxu0 %v2223
    %2761 = vmatprep.subr.mxu0 0.0
    %2762 = vmatpush1.msra.mxu0 %v2224
    %2763 = vmatprep.subr.mxu0 0.0
    %2764 = vmatpush1.msra.mxu0 %v2225
    %2765 = vmatprep.subr.mxu0 0.0
    %2766 = vmatpush1.msra.mxu0 %v2226
    %2767 = vmatprep.subr.mxu0 0.0
    %2768 = vmatpush1.msra.mxu0 %v2227
    %2769 = vmatprep.subr.mxu0 0.0
    %2770 = vmatpush1.msra.mxu0 %v2228
    %2771 = vmatprep.subr.mxu0 0.0
    %2772 = vmatpush1.msra.mxu0 %v2229
    %2773 = vmatprep.subr.mxu0 0.0
    %2774 = vmatpush1.msra.mxu0 %v2230
    %2775 = vmatprep.subr.mxu0 0.0
    %2776 = vmatpush1.msra.mxu0 %v2231
    %2777 = vmatprep.subr.mxu0 0.0
    %2778 = vmatpush1.msra.mxu0 %v2232
    %2779 = vmatprep.subr.mxu0 0.0
    %2780 = vmatpush1.msra.mxu0 %v2233
    %2781 = vmatprep.subr.mxu0 0.0
    %2782 = vmatpush1.msra.mxu0 %v2234
    %2783 = vmatprep.subr.mxu0 0.0
    %2784 = vmatpush1.msra.mxu0 %v2235
    %2785 = vmatprep.subr.mxu0 0.0
    %2786 = vmatpush1.msra.mxu0 %v2236
    %2787 = vmatprep.subr.mxu0 0.0
    %2788 = vmatpush1.msra.mxu0 %v2237
    %2789 = vmatprep.subr.mxu0 0.0
    %2790 = vmatpush1.msra.mxu0 %v2238
    %2791 = vmatprep.subr.mxu0 0.0
    %2792 = vmatpush1.msra.mxu0 %v2239
    %2793 = vmatprep.subr.mxu0 0.0
    %2794 = vmatpush1.msra.mxu0 %v2240
    %2795 = vmatprep.subr.mxu0 0.0
    %2796 = vmatpush1.msra.mxu0 %v2241
    %2797 = vmatprep.subr.mxu0 0.0
    %2798 = vmatpush1.msra.mxu0 %v2242
    %2799 = vmatprep.subr.mxu0 0.0
    %2800 = vmatpush1.msra.mxu0 %v2243
    %2801 = vmatprep.subr.mxu0 0.0
    %2802 = vmatpush1.msra.mxu0 %v2244
    %2803 = vmatprep.subr.mxu0 0.0
    %2804 = vmatpush1.msra.mxu0 %v2245
    %2805 = vmatprep.mubr.f32.mxu0 %v2072
    %2806 = vmatmul.mubr.f32.gmra.mrb[0].mxu0 %v2071
    %v2807 = vpop.f32.mrb[0].mxu0
    %v2808 = vadd.f32 %v2738, %v2807
    %v2809 = vpop.f32.mrb[0].mxu0
    %2810 = vdwg.mxu0
    %2811 = vmatprep.subr.mxu0 0.0
    %2812 = vmatpush1.msra.mxu0 %v2246
    %2813 = vmatprep.subr.mxu0 0.0
    %2814 = vmatpush1.msra.mxu0 %v2247
    %2815 = vmatprep.subr.mxu0 0.0
    %2816 = vmatpush1.msra.mxu0 %v2248
    %2817 = vmatprep.subr.mxu0 0.0
    %2818 = vmatpush1.msra.mxu0 %v2249
    %2819 = vmatprep.subr.mxu0 0.0
    %2820 = vmatpush1.msra.mxu0 %v2250
    %2821 = vmatprep.subr.mxu0 0.0
    %2822 = vmatpush1.msra.mxu0 %v2251
    %2823 = vmatprep.subr.mxu0 0.0
    %2824 = vmatpush1.msra.mxu0 %v2252
    %2825 = vmatprep.subr.mxu0 0.0
    %2826 = vmatpush1.msra.mxu0 %v2253
    %2827 = vmatprep.subr.mxu0 0.0
    %2828 = vmatpush1.msra.mxu0 %v2254
    %2829 = vmatprep.subr.mxu0 0.0
    %2830 = vmatpush1.msra.mxu0 %v2255
    %2831 = vmatprep.subr.mxu0 0.0
    %2832 = vmatpush1.msra.mxu0 %v2256
    %2833 = vmatprep.subr.mxu0 0.0
    %2834 = vmatpush1.msra.mxu0 %v2257
    %2835 = vmatprep.subr.mxu0 0.0
    %2836 = vmatpush1.msra.mxu0 %v2258
    %2837 = vmatprep.subr.mxu0 0.0
    %2838 = vmatpush1.msra.mxu0 %v2259
    %2839 = vmatprep.subr.mxu0 0.0
    %2840 = vmatpush1.msra.mxu0 %v2260
    %2841 = vmatprep.subr.mxu0 0.0
    %2842 = vmatpush1.msra.mxu0 %v2261
    %2843 = vmatprep.subr.mxu0 0.0
    %2844 = vmatpush1.msra.mxu0 %v2262
    %2845 = vmatprep.subr.mxu0 0.0
    %2846 = vmatpush1.msra.mxu0 %v2263
    %2847 = vmatprep.subr.mxu0 0.0
    %2848 = vmatpush1.msra.mxu0 %v2264
    %2849 = vmatprep.subr.mxu0 0.0
    %2850 = vmatpush1.msra.mxu0 %v2265
    %2851 = vmatprep.subr.mxu0 0.0
    %2852 = vmatpush1.msra.mxu0 %v2266
    %2853 = vmatprep.subr.mxu0 0.0
    %2854 = vmatpush1.msra.mxu0 %v2267
    %2855 = vmatprep.subr.mxu0 0.0
    %2856 = vmatpush1.msra.mxu0 %v2268
    %2857 = vmatprep.subr.mxu0 0.0
    %2858 = vmatpush1.msra.mxu0 %v2269
    %2859 = vmatprep.subr.mxu0 0.0
    %2860 = vmatpush1.msra.mxu0 %v2270
    %2861 = vmatprep.subr.mxu0 0.0
    %2862 = vmatpush1.msra.mxu0 %v2271
    %2863 = vmatprep.subr.mxu0 0.0
    %2864 = vmatpush1.msra.mxu0 %v2272
    %2865 = vmatprep.subr.mxu0 0.0
    %2866 = vmatpush1.msra.mxu0 %v2273
    %2867 = vmatprep.subr.mxu0 0.0
    %2868 = vmatpush1.msra.mxu0 %v2274
    %2869 = vmatprep.subr.mxu0 0.0
    %2870 = vmatpush1.msra.mxu0 %v2275
    %2871 = vmatprep.subr.mxu0 0.0
    %2872 = vmatpush1.msra.mxu0 %v2276
    %2873 = vmatprep.subr.mxu0 0.0
    %2874 = vmatpush1.msra.mxu0 %v2277
    %2875 = vmatprep.mubr.f32.mxu0 %v2074
    %2876 = vmatmul.mubr.f32.gmra.mrb[0].mxu0 %v2073
    %v2877 = vpop.f32.mrb[0].mxu0
    %v2878 = vadd.f32 %v2808, %v2877
    %v2879 = vpop.f32.mrb[0].mxu0
    %2880 = vdwg.mxu0
    %2881 = vmatprep.subr.mxu0 0.0
    %2882 = vmatpush1.msra.mxu0 %v2278
    %2883 = vmatprep.subr.mxu0 0.0
    %2884 = vmatpush1.msra.mxu0 %v2279
    %2885 = vmatprep.subr.mxu0 0.0
    %2886 = vmatpush1.msra.mxu0 %v2280
    %2887 = vmatprep.subr.mxu0 0.0
    %2888 = vmatpush1.msra.mxu0 %v2281
    %2889 = vmatprep.subr.mxu0 0.0
    %2890 = vmatpush1.msra.mxu0 %v2282
    %2891 = vmatprep.subr.mxu0 0.0
    %2892 = vmatpush1.msra.mxu0 %v2283
    %2893 = vmatprep.subr.mxu0 0.0
    %2894 = vmatpush1.msra.mxu0 %v2284
    %2895 = vmatprep.subr.mxu0 0.0
    %2896 = vmatpush1.msra.mxu0 %v2285
    %2897 = vmatprep.subr.mxu0 0.0
    %2898 = vmatpush1.msra.mxu0 %v2286
    %2899 = vmatprep.subr.mxu0 0.0
    %2900 = vmatpush1.msra.mxu0 %v2287
    %2901 = vmatprep.subr.mxu0 0.0
    %2902 = vmatpush1.msra.mxu0 %v2288
    %2903 = vmatprep.subr.mxu0 0.0
    %2904 = vmatpush1.msra.mxu0 %v2289
    %2905 = vmatprep.subr.mxu0 0.0
    %2906 = vmatpush1.msra.mxu0 %v2290
    %2907 = vmatprep.subr.mxu0 0.0
    %2908 = vmatpush1.msra.mxu0 %v2291
    %2909 = vmatprep.subr.mxu0 0.0
    %2910 = vmatpush1.msra.mxu0 %v2292
    %2911 = vmatprep.subr.mxu0 0.0
    %2912 = vmatpush1.msra.mxu0 %v2293
    %2913 = vmatprep.subr.mxu0 0.0
    %2914 = vmatpush1.msra.mxu0 %v2294
    %2915 = vmatprep.subr.mxu0 0.0
    %2916 = vmatpush1.msra.mxu0 %v2295
    %2917 = vmatprep.subr.mxu0 0.0
    %2918 = vmatpush1.msra.mxu0 %v2296
    %2919 = vmatprep.subr.mxu0 0.0
    %2920 = vmatpush1.msra.mxu0 %v2297
    %2921 = vmatprep.subr.mxu0 0.0
    %2922 = vmatpush1.msra.mxu0 %v2298
    %2923 = vmatprep.subr.mxu0 0.0
    %2924 = vmatpush1.msra.mxu0 %v2299
    %2925 = vmatprep.subr.mxu0 0.0
    %2926 = vmatpush1.msra.mxu0 %v2300
    %2927 = vmatprep.subr.mxu0 0.0
    %2928 = vmatpush1.msra.mxu0 %v2301
    %2929 = vmatprep.subr.mxu0 0.0
    %2930 = vmatpush1.msra.mxu0 %v2302
    %2931 = vmatprep.subr.mxu0 0.0
    %2932 = vmatpush1.msra.mxu0 %v2303
    %2933 = vmatprep.subr.mxu0 0.0
    %2934 = vmatpush1.msra.mxu0 %v2304
    %2935 = vmatprep.subr.mxu0 0.0
    %2936 = vmatpush1.msra.mxu0 %v2305
    %2937 = vmatprep.subr.mxu0 0.0
    %2938 = vmatpush1.msra.mxu0 %v2306
    %2939 = vmatprep.subr.mxu0 0.0
    %2940 = vmatpush1.msra.mxu0 %v2307
    %2941 = vmatprep.subr.mxu0 0.0
    %2942 = vmatpush1.msra.mxu0 %v2308
    %2943 = vmatprep.subr.mxu0 0.0
    %2944 = vmatpush1.msra.mxu0 %v2309
    %2945 = vmatprep.mubr.f32.mxu0 %v2076
    %2946 = vmatmul.mubr.f32.gmra.mrb[0].mxu0 %v2075
    %v2947 = vpop.f32.mrb[0].mxu0
    %v2948 = vadd.f32 %v2878, %v2947
    %v2949 = vpop.f32.mrb[0].mxu0
    %2950 = vdwg.mxu0
    %2951 = vmatprep.subr.mxu0 0.0
    %2952 = vmatpush1.msra.mxu0 %v2310
    %2953 = vmatprep.subr.mxu0 0.0
    %2954 = vmatpush1.msra.mxu0 %v2311
    %2955 = vmatprep.subr.mxu0 0.0
    %2956 = vmatpush1.msra.mxu0 %v2312
    %2957 = vmatprep.subr.mxu0 0.0
    %2958 = vmatpush1.msra.mxu0 %v2313
    %2959 = vmatprep.subr.mxu0 0.0
    %2960 = vmatpush1.msra.mxu0 %v2314
    %2961 = vmatprep.subr.mxu0 0.0
    %2962 = vmatpush1.msra.mxu0 %v2315
    %2963 = vmatprep.subr.mxu0 0.0
    %2964 = vmatpush1.msra.mxu0 %v2316
    %2965 = vmatprep.subr.mxu0 0.0
    %2966 = vmatpush1.msra.mxu0 %v2317
    %2967 = vmatprep.subr.mxu0 0.0
    %2968 = vmatpush1.msra.mxu0 %v2318
    %2969 = vmatprep.subr.mxu0 0.0
    %2970 = vmatpush1.msra.mxu0 %v2319
    %2971 = vmatprep.subr.mxu0 0.0
    %2972 = vmatpush1.msra.mxu0 %v2320
    %2973 = vmatprep.subr.mxu0 0.0
    %2974 = vmatpush1.msra.mxu0 %v2321
    %2975 = vmatprep.subr.mxu0 0.0
    %2976 = vmatpush1.msra.mxu0 %v2322
    %2977 = vmatprep.subr.mxu0 0.0
    %2978 = vmatpush1.msra.mxu0 %v2323
    %2979 = vmatprep.subr.mxu0 0.0
    %2980 = vmatpush1.msra.mxu0 %v2324
    %2981 = vmatprep.subr.mxu0 0.0
    %2982 = vmatpush1.msra.mxu0 %v2325
    %2983 = vmatprep.subr.mxu0 0.0
    %2984 = vmatpush1.msra.mxu0 %v2326
    %2985 = vmatprep.subr.mxu0 0.0
    %2986 = vmatpush1.msra.mxu0 %v2327
    %2987 = vmatprep.subr.mxu0 0.0
    %2988 = vmatpush1.msra.mxu0 %v2328
    %2989 = vmatprep.subr.mxu0 0.0
    %2990 = vmatpush1.msra.mxu0 %v2329
    %2991 = vmatprep.subr.mxu0 0.0
    %2992 = vmatpush1.msra.mxu0 %v2330
    %2993 = vmatprep.subr.mxu0 0.0
    %2994 = vmatpush1.msra.mxu0 %v2331
    %2995 = vmatprep.subr.mxu0 0.0
    %2996 = vmatpush1.msra.mxu0 %v2332
    %2997 = vmatprep.subr.mxu0 0.0
    %2998 = vmatpush1.msra.mxu0 %v2333
    %2999 = vmatprep.subr.mxu0 0.0
    %3000 = vmatpush1.msra.mxu0 %v2334
    %3001 = vmatprep.subr.mxu0 0.0
    %3002 = vmatpush1.msra.mxu0 %v2335
    %3003 = vmatprep.subr.mxu0 0.0
    %3004 = vmatpush1.msra.mxu0 %v2336
    %3005 = vmatprep.subr.mxu0 0.0
    %3006 = vmatpush1.msra.mxu0 %v2337
    %3007 = vmatprep.subr.mxu0 0.0
    %3008 = vmatpush1.msra.mxu0 %v2338
    %3009 = vmatprep.subr.mxu0 0.0
    %3010 = vmatpush1.msra.mxu0 %v2339
    %3011 = vmatprep.subr.mxu0 0.0
    %3012 = vmatpush1.msra.mxu0 %v2340
    %3013 = vmatprep.subr.mxu0 0.0
    %3014 = vmatpush1.msra.mxu0 %v2341
    %3015 = vmatprep.mubr.f32.mxu0 %v2078
    %3016 = vmatmul.mubr.f32.gmra.mrb[0].mxu0 %v2077
    %v3017 = vpop.f32.mrb[0].mxu0
    %v3018 = vadd.f32 %v2948, %v3017
    %v3019 = vpop.f32.mrb[0].mxu0
    %3020 = vdwg.mxu0
    %3021 = vmatprep.subr.mxu0 0.0
    %3022 = vmatpush1.msra.mxu0 %v2342
    %3023 = vmatprep.subr.mxu0 0.0
    %3024 = vmatpush1.msra.mxu0 %v2343
    %3025 = vmatprep.subr.mxu0 0.0
    %3026 = vmatpush1.msra.mxu0 %v2344
    %3027 = vmatprep.subr.mxu0 0.0
    %3028 = vmatpush1.msra.mxu0 %v2345
    %3029 = vmatprep.subr.mxu0 0.0
    %3030 = vmatpush1.msra.mxu0 %v2346
    %3031 = vmatprep.subr.mxu0 0.0
    %3032 = vmatpush1.msra.mxu0 %v2347
    %3033 = vmatprep.subr.mxu0 0.0
    %3034 = vmatpush1.msra.mxu0 %v2348
    %3035 = vmatprep.subr.mxu0 0.0
    %3036 = vmatpush1.msra.mxu0 %v2349
    %3037 = vmatprep.subr.mxu0 0.0
    %3038 = vmatpush1.msra.mxu0 %v2350
    %3039 = vmatprep.subr.mxu0 0.0
    %3040 = vmatpush1.msra.mxu0 %v2351
    %3041 = vmatprep.subr.mxu0 0.0
    %3042 = vmatpush1.msra.mxu0 %v2352
    %3043 = vmatprep.subr.mxu0 0.0
    %3044 = vmatpush1.msra.mxu0 %v2353
    %3045 = vmatprep.subr.mxu0 0.0
    %3046 = vmatpush1.msra.mxu0 %v2354
    %3047 = vmatprep.subr.mxu0 0.0
    %3048 = vmatpush1.msra.mxu0 %v2355
    %3049 = vmatprep.subr.mxu0 0.0
    %3050 = vmatpush1.msra.mxu0 %v2356
    %3051 = vmatprep.subr.mxu0 0.0
    %3052 = vmatpush1.msra.mxu0 %v2357
    %3053 = vmatprep.subr.mxu0 0.0
    %3054 = vmatpush1.msra.mxu0 %v2358
    %3055 = vmatprep.subr.mxu0 0.0
    %3056 = vmatpush1.msra.mxu0 %v2359
    %3057 = vmatprep.subr.mxu0 0.0
    %3058 = vmatpush1.msra.mxu0 %v2360
    %3059 = vmatprep.subr.mxu0 0.0
    %3060 = vmatpush1.msra.mxu0 %v2361
    %3061 = vmatprep.subr.mxu0 0.0
    %3062 = vmatpush1.msra.mxu0 %v2362
    %3063 = vmatprep.subr.mxu0 0.0
    %3064 = vmatpush1.msra.mxu0 %v2363
    %3065 = vmatprep.subr.mxu0 0.0
    %3066 = vmatpush1.msra.mxu0 %v2364
    %3067 = vmatprep.subr.mxu0 0.0
    %3068 = vmatpush1.msra.mxu0 %v2365
    %3069 = vmatprep.subr.mxu0 0.0
    %3070 = vmatpush1.msra.mxu0 %v2366
    %3071 = vmatprep.subr.mxu0 0.0
    %3072 = vmatpush1.msra.mxu0 %v2367
    %3073 = vmatprep.subr.mxu0 0.0
    %3074 = vmatpush1.msra.mxu0 %v2368
    %3075 = vmatprep.subr.mxu0 0.0
    %3076 = vmatpush1.msra.mxu0 %v2369
    %3077 = vmatprep.subr.mxu0 0.0
    %3078 = vmatpush1.msra.mxu0 %v2370
    %3079 = vmatprep.subr.mxu0 0.0
    %3080 = vmatpush1.msra.mxu0 %v2371
    %3081 = vmatprep.subr.mxu0 0.0
    %3082 = vmatpush1.msra.mxu0 %v2372
    %3083 = vmatprep.subr.mxu0 0.0
    %3084 = vmatpush1.msra.mxu0 %v2373
    %3085 = vmatprep.mubr.f32.mxu0 %v2080
    %3086 = vmatmul.mubr.f32.gmra.mrb[0].mxu0 %v2079
    %v3087 = vpop.f32.mrb[0].mxu0
    %v3088 = vadd.f32 %v3018, %v3087
    %v3089 = vpop.f32.mrb[0].mxu0
    %3090 = vdwg.mxu0
    %3091 = vmatprep.subr.mxu0 0.0
    %3092 = vmatpush1.msra.mxu0 %v2374
    %3093 = vmatprep.subr.mxu0 0.0
    %3094 = vmatpush1.msra.mxu0 %v2375
    %3095 = vmatprep.subr.mxu0 0.0
    %3096 = vmatpush1.msra.mxu0 %v2376
    %3097 = vmatprep.subr.mxu0 0.0
    %3098 = vmatpush1.msra.mxu0 %v2377
    %3099 = vmatprep.subr.mxu0 0.0
    %3100 = vmatpush1.msra.mxu0 %v2378
    %3101 = vmatprep.subr.mxu0 0.0
    %3102 = vmatpush1.msra.mxu0 %v2379
    %3103 = vmatprep.subr.mxu0 0.0
    %3104 = vmatpush1.msra.mxu0 %v2380
    %3105 = vmatprep.subr.mxu0 0.0
    %3106 = vmatpush1.msra.mxu0 %v2381
    %3107 = vmatprep.subr.mxu0 0.0
    %3108 = vmatpush1.msra.mxu0 %v2382
    %3109 = vmatprep.subr.mxu0 0.0
    %3110 = vmatpush1.msra.mxu0 %v2383
    %3111 = vmatprep.subr.mxu0 0.0
    %3112 = vmatpush1.msra.mxu0 %v2384
    %3113 = vmatprep.subr.mxu0 0.0
    %3114 = vmatpush1.msra.mxu0 %v2385
    %3115 = vmatprep.subr.mxu0 0.0
    %3116 = vmatpush1.msra.mxu0 %v2386
    %3117 = vmatprep.subr.mxu0 0.0
    %3118 = vmatpush1.msra.mxu0 %v2387
    %3119 = vmatprep.subr.mxu0 0.0
    %3120 = vmatpush1.msra.mxu0 %v2388
    %3121 = vmatprep.subr.mxu0 0.0
    %3122 = vmatpush1.msra.mxu0 %v2389
    %3123 = vmatprep.subr.mxu0 0.0
    %3124 = vmatpush1.msra.mxu0 %v2390
    %3125 = vmatprep.subr.mxu0 0.0
    %3126 = vmatpush1.msra.mxu0 %v2391
    %3127 = vmatprep.subr.mxu0 0.0
    %3128 = vmatpush1.msra.mxu0 %v2392
    %3129 = vmatprep.subr.mxu0 0.0
    %3130 = vmatpush1.msra.mxu0 %v2393
    %3131 = vmatprep.subr.mxu0 0.0
    %3132 = vmatpush1.msra.mxu0 %v2394
    %3133 = vmatprep.subr.mxu0 0.0
    %3134 = vmatpush1.msra.mxu0 %v2395
    %3135 = vmatprep.subr.mxu0 0.0
    %3136 = vmatpush1.msra.mxu0 %v2396
    %3137 = vmatprep.subr.mxu0 0.0
    %3138 = vmatpush1.msra.mxu0 %v2397
    %3139 = vmatprep.subr.mxu0 0.0
    %3140 = vmatpush1.msra.mxu0 %v2398
    %3141 = vmatprep.subr.mxu0 0.0
    %3142 = vmatpush1.msra.mxu0 %v2399
    %3143 = vmatprep.subr.mxu0 0.0
    %3144 = vmatpush1.msra.mxu0 %v2400
    %3145 = vmatprep.subr.mxu0 0.0
    %3146 = vmatpush1.msra.mxu0 %v2401
    %3147 = vmatprep.subr.mxu0 0.0
    %3148 = vmatpush1.msra.mxu0 %v2402
    %3149 = vmatprep.subr.mxu0 0.0
    %3150 = vmatpush1.msra.mxu0 %v2403
    %3151 = vmatprep.subr.mxu0 0.0
    %3152 = vmatpush1.msra.mxu0 %v2404
    %3153 = vmatprep.subr.mxu0 0.0
    %3154 = vmatpush1.msra.mxu0 %v2405
    %3155 = vmatprep.mubr.f32.mxu0 %v2082
    %3156 = vmatmul.mubr.f32.gmra.mrb[0].mxu0 %v2081
    %v3157 = vpop.f32.mrb[0].mxu0
    %v3158 = vadd.f32 %v3088, %v3157
    %v3159 = vpop.f32.mrb[0].mxu0
    %3160 = vdwg.mxu0
    %3161 = vmatprep.subr.mxu0 0.0
    %3162 = vmatpush1.msra.mxu0 %v2406
    %3163 = vmatprep.subr.mxu0 0.0
    %3164 = vmatpush1.msra.mxu0 %v2407
    %3165 = vmatprep.subr.mxu0 0.0
    %3166 = vmatpush1.msra.mxu0 %v2408
    %3167 = vmatprep.subr.mxu0 0.0
    %3168 = vmatpush1.msra.mxu0 %v2409
    %3169 = vmatprep.subr.mxu0 0.0
    %3170 = vmatpush1.msra.mxu0 %v2410
    %3171 = vmatprep.subr.mxu0 0.0
    %3172 = vmatpush1.msra.mxu0 %v2411
    %3173 = vmatprep.subr.mxu0 0.0
    %3174 = vmatpush1.msra.mxu0 %v2412
    %3175 = vmatprep.subr.mxu0 0.0
    %3176 = vmatpush1.msra.mxu0 %v2413
    %3177 = vmatprep.subr.mxu0 0.0
    %3178 = vmatpush1.msra.mxu0 %v2414
    %3179 = vmatprep.subr.mxu0 0.0
    %3180 = vmatpush1.msra.mxu0 %v2415
    %3181 = vmatprep.subr.mxu0 0.0
    %3182 = vmatpush1.msra.mxu0 %v2416
    %3183 = vmatprep.subr.mxu0 0.0
    %3184 = vmatpush1.msra.mxu0 %v2417
    %3185 = vmatprep.subr.mxu0 0.0
    %3186 = vmatpush1.msra.mxu0 %v2418
    %3187 = vmatprep.subr.mxu0 0.0
    %3188 = vmatpush1.msra.mxu0 %v2419
    %3189 = vmatprep.subr.mxu0 0.0
    %3190 = vmatpush1.msra.mxu0 %v2420
    %3191 = vmatprep.subr.mxu0 0.0
    %3192 = vmatpush1.msra.mxu0 %v2421
    %3193 = vmatprep.subr.mxu0 0.0
    %3194 = vmatpush1.msra.mxu0 %v2422
    %3195 = vmatprep.subr.mxu0 0.0
    %3196 = vmatpush1.msra.mxu0 %v2423
    %3197 = vmatprep.subr.mxu0 0.0
    %3198 = vmatpush1.msra.mxu0 %v2424
    %3199 = vmatprep.subr.mxu0 0.0
    %3200 = vmatpush1.msra.mxu0 %v2425
    %3201 = vmatprep.subr.mxu0 0.0
    %3202 = vmatpush1.msra.mxu0 %v2426
    %3203 = vmatprep.subr.mxu0 0.0
    %3204 = vmatpush1.msra.mxu0 %v2427
    %3205 = vmatprep.subr.mxu0 0.0
    %3206 = vmatpush1.msra.mxu0 %v2428
    %3207 = vmatprep.subr.mxu0 0.0
    %3208 = vmatpush1.msra.mxu0 %v2429
    %3209 = vmatprep.subr.mxu0 0.0
    %3210 = vmatpush1.msra.mxu0 %v2430
    %3211 = vmatprep.subr.mxu0 0.0
    %3212 = vmatpush1.msra.mxu0 %v2431
    %3213 = vmatprep.subr.mxu0 0.0
    %3214 = vmatpush1.msra.mxu0 %v2432
    %3215 = vmatprep.subr.mxu0 0.0
    %3216 = vmatpush1.msra.mxu0 %v2433
    %3217 = vmatprep.subr.mxu0 0.0
    %3218 = vmatpush1.msra.mxu0 %v2434
    %3219 = vmatprep.subr.mxu0 0.0
    %3220 = vmatpush1.msra.mxu0 %v2435
    %3221 = vmatprep.subr.mxu0 0.0
    %3222 = vmatpush1.msra.mxu0 %v2436
    %3223 = vmatprep.subr.mxu0 0.0
    %3224 = vmatpush1.msra.mxu0 %v2437
    %3225 = vmatprep.mubr.f32.mxu0 %v2084
    %3226 = vmatmul.mubr.f32.gmra.mrb[0].mxu0 %v2083
    %v3227 = vpop.f32.mrb[0].mxu0
    %v3228 = vadd.f32 %v3158, %v3227
    %v3229 = vpop.f32.mrb[0].mxu0
    %3230 = vdwg.mxu0
    %3231 = vmatprep.subr.mxu0 0.0
    %3232 = vmatpush1.msra.mxu0 %v2438
    %3233 = vmatprep.subr.mxu0 0.0
    %3234 = vmatpush1.msra.mxu0 %v2439
    %3235 = vmatprep.subr.mxu0 0.0
    %3236 = vmatpush1.msra.mxu0 %v2440
    %3237 = vmatprep.subr.mxu0 0.0
    %3238 = vmatpush1.msra.mxu0 %v2441
    %3239 = vmatprep.subr.mxu0 0.0
    %3240 = vmatpush1.msra.mxu0 %v2442
    %3241 = vmatprep.subr.mxu0 0.0
    %3242 = vmatpush1.msra.mxu0 %v2443
    %3243 = vmatprep.subr.mxu0 0.0
    %3244 = vmatpush1.msra.mxu0 %v2444
    %3245 = vmatprep.subr.mxu0 0.0
    %3246 = vmatpush1.msra.mxu0 %v2445
    %3247 = vmatprep.subr.mxu0 0.0
    %3248 = vmatpush1.msra.mxu0 %v2446
    %3249 = vmatprep.subr.mxu0 0.0
    %3250 = vmatpush1.msra.mxu0 %v2447
    %3251 = vmatprep.subr.mxu0 0.0
    %3252 = vmatpush1.msra.mxu0 %v2448
    %3253 = vmatprep.subr.mxu0 0.0
    %3254 = vmatpush1.msra.mxu0 %v2449
    %3255 = vmatprep.subr.mxu0 0.0
    %3256 = vmatpush1.msra.mxu0 %v2450
    %3257 = vmatprep.subr.mxu0 0.0
    %3258 = vmatpush1.msra.mxu0 %v2451
    %3259 = vmatprep.subr.mxu0 0.0
    %3260 = vmatpush1.msra.mxu0 %v2452
    %3261 = vmatprep.subr.mxu0 0.0
    %3262 = vmatpush1.msra.mxu0 %v2453
    %3263 = vmatprep.subr.mxu0 0.0
    %3264 = vmatpush1.msra.mxu0 0.0
    %3265 = vmatprep.subr.mxu0 0.0
    %3266 = vmatpush1.msra.mxu0 0.0
    %3267 = vmatprep.subr.mxu0 0.0
    %3268 = vmatpush1.msra.mxu0 0.0
    %3269 = vmatprep.subr.mxu0 0.0
    %3270 = vmatpush1.msra.mxu0 0.0
    %3271 = vmatprep.subr.mxu0 0.0
    %3272 = vmatpush1.msra.mxu0 0.0
    %3273 = vmatprep.subr.mxu0 0.0
    %3274 = vmatpush1.msra.mxu0 0.0
    %3275 = vmatprep.subr.mxu0 0.0
    %3276 = vmatpush1.msra.mxu0 0.0
    %3277 = vmatprep.subr.mxu0 0.0
    %3278 = vmatpush1.msra.mxu0 0.0
    %3279 = vmatprep.subr.mxu0 0.0
    %3280 = vmatpush1.msra.mxu0 0.0
    %3281 = vmatprep.subr.mxu0 0.0
    %3282 = vmatpush1.msra.mxu0 0.0
    %3283 = vmatprep.subr.mxu0 0.0
    %3284 = vmatpush1.msra.mxu0 0.0
    %3285 = vmatprep.subr.mxu0 0.0
    %3286 = vmatpush1.msra.mxu0 0.0
    %3287 = vmatprep.subr.mxu0 0.0
    %3288 = vmatpush1.msra.mxu0 0.0
    %3289 = vmatprep.subr.mxu0 0.0
    %3290 = vmatpush1.msra.mxu0 0.0
    %3291 = vmatprep.subr.mxu0 0.0
    %3292 = vmatpush1.msra.mxu0 0.0
    %3293 = vmatprep.subr.mxu0 0.0
    %3294 = vmatpush1.msra.mxu0 0.0
    %3295 = vmatprep.mubr.f32.mxu0 0.0
    %3296 = vmatmul.mubr.f32.gmra.mrb[0].mxu0 %v2085
    %v3297 = vpop.f32.mrb[0].mxu0
    %v3298 = vadd.f32 %v3228, %v3297
    %v3299 = vpop.f32.mrb[0].mxu0
    %3300 = vdwg.mxu0
    %vm3301 = vcmask 812032
    %3302 = vst.msk [vmem:[#allocation2] sm:$0x3] %vm3301, %v3298
    // Predicated region
    $region22: #{tpu_custom_call.1} parent=1 // pred_check
      _
    $region23: #{tpu_custom_call.1} parent=1 // pred_check_branch
      %3304 = sbr.rel (0) target = $region25
    $region24: #{tpu_custom_call.1} parent=1 // pred_region
      %s3306 = ssub.s32 32, 32
      %3307 = vsyncadd [#allocation3], %s3306
      %s3309 = sshll.u32 [#allocation2], 4
      %s3310 = int_to_ptr.vmem [resolvable:$true] %s3309
      %3312 = dma.vmem_to_hbm [thread:$0]  %s3310, 32, %s5, [#allocation3]
    $region25: #{tpu_custom_call.1} parent=1 // pred_fallthru
      _
    // Predicated region
    $region26: #{tpu_custom_call.1} parent=1 // pred_check
      _
    $region27: #{tpu_custom_call.1} parent=1 // pred_check_branch
      %3314 = sbr.rel (0) target = $region29
    $region28: #{tpu_custom_call.1} parent=1 // pred_region
      %3315 = dma.done [#allocation3], 32
    $region29: #{tpu_custom_call.1} parent=1 // pred_fallthru
      _
    %3316 = vsyncpa [#allocation3], 1

</llo_original>
